<compile_context>
chip_gen: v5e
topology: v5e:2x2
jax: 0.10.0
libtpu: 0.0.40
codegen_flags: <defaults>
</compile_context>

<pallas_src>
import functools

import jax
import jax.numpy as jnp
import numpy as np
from jax.experimental import pallas as pl
from jax.experimental.pallas import tpu as pltpu


def _emission_loss_kernel(test_ref,      # VMEM (Bt, 1, D)    f32  CLS reps
                          sup_ref,       # VMEM (Bt, S*L, D)  bf16 support tokens
                          wtok_ref,      # VMEM (Bt, S*L)     f32  masked-mean token weights
                          lbl_ref,       # VMEM (Bt, S)       i32  support labels (-1 = pad row)
                          tgt_ref,       # VMEM (Bt, 1)       i32  test labels (1..NT, 0 = pad)
                          emission_ref,  # VMEM (Bt, NTp)     f32  out (lane-dense slab)
                          loss_ref,      # VMEM (Bt, 1)       f32  out (per-example NLL)
                          *, num_tags):
    Bt, _, D = test_ref.shape
    _, SL, _ = sup_ref.shape
    S = lbl_ref.shape[-1]
    L = SL // S
    NTp = emission_ref.shape[-1]

    # --- token scores on the MXU: tv[b, k] = <cls_b, support_token_{b,k}> (contract D) ---
    # bf16 x bf16 inputs (native MXU), f32 accumulation; single pass (no HIGHEST).
    tv = jax.lax.dot_general(
        test_ref[...].astype(jnp.bfloat16), sup_ref[...],
        dimension_numbers=(((2,), (2,)), ((0,), (0,))),
        preferred_element_type=jnp.float32)               # (Bt, 1, S*L)
    tvf = tv[:, 0, :]                                     # (Bt, S*L) flat (no S,L reshape)

    # --- per-sentence masked means via a constant segment matrix (no relayout) ---
    wtv = wtok_ref[...] * tvf                             # (Bt, S*L) f32
    k_iota = jax.lax.broadcasted_iota(jnp.int32, (SL, S), 0)
    s_iota = jax.lax.broadcasted_iota(jnp.int32, (SL, S), 1) * L
    seg = jnp.logical_and(k_iota >= s_iota, k_iota < s_iota + L).astype(jnp.float32)
    # Tiny (Bt,S*L)x(S*L,S) dot; HIGHEST here is negligible and keeps f32-level sums.
    score = jax.lax.dot_general(
        wtv, seg, dimension_numbers=(((1,), (0,)), ((), ())),
        precision=jax.lax.Precision.HIGHEST,
        preferred_element_type=jnp.float32)               # (Bt, S)

    # --- per-class mean (prototype dot) without materializing prototypes ---
    lbl = lbl_ref[...]                                    # (Bt, S) int32
    cls_iota = jax.lax.broadcasted_iota(jnp.int32, (Bt, S, NTp), 2)
    oh = (lbl[:, :, None] == cls_iota).astype(jnp.float32)    # (Bt, S, NTp); pad rows (-1) -> 0
    counts = jnp.sum(oh, axis=1)                              # (Bt, NTp)
    em = jnp.sum(score[:, :, None] * oh, axis=1) / (counts + 1e-8)   # (Bt, NTp)
    emission_ref[...] = em                                    # lane-dense unmasked store

    # --- single-label cross-entropy decoder over the NT valid columns ---
    tags = jnp.maximum(tgt_ref[...] - 1, 0)               # (Bt, 1) int32, relu(t - 1)
    col = jax.lax.broadcasted_iota(jnp.int32, (Bt, NTp), 1)
    valid = col < num_tags
    m = jnp.max(jnp.where(valid, em, jnp.float32(-1e30)), axis=-1, keepdims=True)
    p = jnp.where(valid, jnp.exp(em - m), 0.0)
    lse = jnp.log(jnp.sum(p, axis=-1, keepdims=True)) + m
    logp = em - lse                                       # (Bt, NTp), finite everywhere
    tag_oh = (col == tags).astype(jnp.float32)            # tags < NT, always a valid column
    loss_ref[...] = -jnp.sum(tag_oh * logp, axis=-1, keepdims=True)   # (Bt, 1)


def _pick_batch_tile(B, bytes_per_example, vmem_budget=12 * 1024 * 1024):
    """Largest legal batch tile whose double-buffered working set stays under
    `vmem_budget` (safe vs v5e's 16 MiB scoped-VMEM default and v7x's 64 MiB/TC VMEM),
    preferring >= 2 grid steps so v7x's two TensorCores both get work and the BlockSpec
    pipeline can double-buffer.  Bigger tiles amortize the ~0.35 us per-step overhead."""
    divisors = [d for d in range(1, B + 1) if B % d == 0]
    legal = [d for d in divisors if (d % 8 == 0 or d == B)]   # (8,128) block rule on Bt
    fits = [d for d in legal if 2 * d * bytes_per_example <= vmem_budget]
    if not fits:
        # TODO(synk): single examples too large for VMEM need the S*L-split grid axis.
        return min(legal)
    two_step = [d for d in fits if B // d >= 2]
    return max(two_step) if two_step else max(fits)


def schema_few_shot_text_classifier(test_reps, test_output_mask, support_reps,
                                    support_output_mask, test_target, support_target,
                                    *, batch_tile=None):
    """Returns (intent_emission (B,1,NT), scalar loss).  test_output_mask is accepted for
    API parity but unused (cal_emission overrides it with ones; the single-label decoder
    ignores the mask)."""
    del test_output_mask
    B, _, D = test_reps.shape
    _, S, L, _ = support_reps.shape
    NT = support_target.shape[-1]
    SL = S * L
    NTp = 128 * pl.cdiv(NT, 128)     # lane-dense emission slab width

    # ---- wrapper-side prep (tiny fused XLA ops: layout plumbing, not compute hoisting) ----
    # CLS rows only; kept f32 (stream is ~D*4 B/example) and cast to bf16 in-kernel, so the
    # (Bt,1,D) BlockSpec keeps its proven aligned shape with no extra bf16 materialization.
    test_cls = test_reps[:, :1, :]                                     # (B, 1, D) f32
    # Support tokens are the dominant HBM stream -> ship as bf16 (native MXU input dtype).
    sup_tok = support_reps.reshape(B, SL, D).astype(jnp.bfloat16)      # (B, S*L, D) bf16
    # Per-token masked-mean weight (same bytes as the raw mask, lane-dense when S*L%128==0):
    #   wtok[b, s*L + l] = msk[b,s,l] / (sum_l msk[b,s,:] + 1e-8)
    msk = support_output_mask.astype(jnp.float32)
    wtok = (msk / (jnp.sum(msk, axis=2, keepdims=True) + 1e-8)).reshape(B, SL)
    # Int32 labels instead of a (B,S,NT) one-hot stream; all-zero (padding) one-hot rows
    # map to -1 so they contribute nothing when the one-hot is rebuilt in-kernel.
    oh_rows = support_target[:, :, 0, :]                               # (B, S, NT)
    sup_lbl = jnp.where(jnp.sum(oh_rows, axis=-1) > 0,
                        jnp.argmax(oh_rows, axis=-1), -1).astype(jnp.int32)   # (B, S)
    tgt = test_target[:, :1].astype(jnp.int32)                         # (B, 1)

    # ---- generation-aware batch tile ----
    bytes_per_example = (SL * D * 2          # sup_tok  bf16
                         + D * 4             # CLS      f32
                         + SL * 4            # wtok     f32
                         + S * 4 + 4         # labels + test target
                         + NTp * 4 + 4)      # emission slab + nll outputs
    if batch_tile is None:
        batch_tile = _pick_batch_tile(B, bytes_per_example)
    Bt = batch_tile
    assert B % Bt == 0 and (Bt % 8 == 0 or Bt == B)

    flops = 2 * B * SL * D + 6 * B * SL * S + 6 * B * S * NTp + 12 * B * NTp
    bytes_accessed = B * bytes_per_example

    emission_pad, nll = pl.pallas_call(
        functools.partial(_emission_loss_kernel, num_tags=NT),
        out_shape=(
            jax.ShapeDtypeStruct((B, NTp), jnp.float32),   # lane-dense emission slab
            jax.ShapeDtypeStruct((B, 1), jnp.float32),     # per-example NLL
        ),
        grid_spec=pltpu.PrefetchScalarGridSpec(
            num_scalar_prefetch=0,
            grid=(B // Bt,),
            in_specs=[
                pl.BlockSpec((Bt, 1, D), lambda b: (b, 0, 0)),
                pl.BlockSpec((Bt, SL, D), lambda b: (b, 0, 0)),
                pl.BlockSpec((Bt, SL), lambda b: (b, 0)),
                pl.BlockSpec((Bt, S), lambda b: (b, 0)),
                # TODO(synk): test targets could ride SMEM via scalar prefetch; kept as a
                # tiny VMEM block (one padded tile/step, hidden under the sup_tok DMA)
                # because the vectorized tag-compare needs them in vregs anyway.
                pl.BlockSpec((Bt, 1), lambda b: (b, 0)),
            ],
            out_specs=[
                pl.BlockSpec((Bt, NTp), lambda b: (b, 0)),
                pl.BlockSpec((Bt, 1), lambda b: (b, 0)),
            ],
        ),
        # "parallel" only shards work on v7x's 2 TCs; harmless (and measured-neutral) on
        # v5e/v6e where the real levers are Bt and the bf16 cast.
        compiler_params=pltpu.CompilerParams(dimension_semantics=("parallel",)),
        cost_estimate=pl.CostEstimate(flops=flops, transcendentals=B * (NTp + 2),
                                      bytes_accessed=bytes_accessed),
    )(test_cls, sup_tok, wtok, sup_lbl, tgt)

    emission = emission_pad[:, :NT][:, None, :]            # (B, 1, NT)
    loss = jnp.mean(nll)
    return emission, loss


def _reference(test_reps, support_reps, support_output_mask, test_target, support_target,
               *, round_reps_to_bf16=False):
    # Pure elementwise/reduce f32 reference (no XLA matmul precision ambiguity).
    if round_reps_to_bf16:
        test_reps = test_reps.astype(jnp.bfloat16).astype(jnp.float32)
        support_reps = support_reps.astype(jnp.bfloat16).astype(jnp.float32)
    msk = support_output_mask
    sent = (support_reps * msk[..., None]).sum(2) / (msk.sum(2, keepdims=True) + 1e-8)
    onehot = support_target[:, :, 0, :]                                   # (B, S, NT)
    proto = (onehot[..., None] * sent[:, :, None, :]).sum(1)              # (B, NT, D)
    proto = proto / (onehot.sum(1)[..., None] + 1e-8)
    test_sent = test_reps[:, 0, :]                                        # (B, D)
    emission = (test_sent[:, None, :] * proto).sum(-1)                    # (B, NT)
    tags = jnp.maximum(test_target[:, 0] - 1, 0)
    logp = jax.nn.log_softmax(emission, axis=-1)
    loss = -jnp.take_along_axis(logp, tags[:, None], axis=1).mean()
    return emission[:, None, :], loss


if __name__ == "__main__":
    B, T, D = 16, 8, 128     # batch, test_len, emb_dim   (grid = 2 even steps for v7x)
    S, L = 8, 16             # support_size, support_len
    M, NT = 1, 8             # multi-label num (=1), num non-pad tags

    key = jax.random.PRNGKey(0)
    k1, k2, k3 = jax.random.split(key, 3)

    test_reps = jax.random.normal(k1, (B, T, D), dtype=jnp.float32)
    support_reps = jax.random.normal(k2, (B, S, L, D), dtype=jnp.float32)

    test_output_mask = jnp.ones((B, T), dtype=jnp.float32)
    # Mask out the tail of each support sentence deterministically (lengths in [L/2+1, L]).
    sup_valid = (jnp.arange(L)[None, None, :]
                 < (L // 2 + jnp.arange(S)[None, :, None] % (L // 2) + 1))
    support_output_mask = jnp.broadcast_to(sup_valid, (B, S, L)).astype(jnp.float32)

    # support labels (already pad-shifted) in [0, NT-1]; one-hot over NT classes
    sup_labels = (jnp.arange(B * S).reshape(B, S) * 3) % NT
    support_target = jax.nn.one_hot(sup_labels, NT, dtype=jnp.float32)[:, :, None, :]  # (B,S,1,NT)

    # test labels in [1, NT]  (0 reserved for pad; forward applies relu(t-1))
    test_target = jax.random.randint(k3, (B, M), 1, NT + 1).astype(jnp.int32)

    emission, loss = schema_few_shot_text_classifier(
        test_reps, test_output_mask, support_reps,
        support_output_mask, test_target, support_target)
    jax.block_until_ready((emission, loss))

    # Tight check against the same math on bf16-rounded reps (exactly what the kernel streams).
    ref_em_q, ref_loss_q = _reference(test_reps, support_reps, support_output_mask,
                                      test_target, support_target, round_reps_to_bf16=True)
    np.testing.assert_allclose(np.asarray(emission), np.asarray(ref_em_q), rtol=2e-3, atol=2e-3)
    np.testing.assert_allclose(np.asarray(loss), np.asarray(ref_loss_q), rtol=2e-3, atol=2e-3)

    # Loose check against the full-f32 module semantics (expected bf16-streaming drift ~1e-2).
    ref_em, ref_loss = _reference(test_reps, support_reps, support_output_mask,
                                  test_target, support_target)
    np.testing.assert_allclose(np.asarray(emission), np.asarray(ref_em), rtol=3e-2, atol=6e-2)
    np.testing.assert_allclose(np.asarray(loss), np.asarray(ref_loss), rtol=3e-2, atol=6e-2)

    print("KERNEL_OK")
</pallas_src>

<mosaic_0001>
module attributes {stable_mosaic.version = 11 : i64} {
  func.func @_emission_loss_kernel(%arg0: i32, %arg1: memref<8x1x128xf32, #tpu.memory_space<vmem>>, %arg2: memref<8x128x128xbf16, #tpu.memory_space<vmem>>, %arg3: memref<8x128xf32, #tpu.memory_space<vmem>>, %arg4: memref<8x8xi32, #tpu.memory_space<vmem>>, %arg5: memref<8x1xi32, #tpu.memory_space<vmem>>, %arg6: memref<8x128xf32, #tpu.memory_space<vmem>>, %arg7: memref<8x1xf32, #tpu.memory_space<vmem>>) attributes {dimension_semantics = [#tpu.dimension_semantics<parallel>], iteration_bounds = array<i64: 2>, scalar_prefetch = 0 : i64, scratch_operands = 0 : i64, tpu.core_type = #tpu.core_type<tc>, window_params = [{transform_indices = @transform_0, window_bounds = array<i64: 8, 1, 128>}, {transform_indices = @transform_1, window_bounds = array<i64: 8, 128, 128>}, {transform_indices = @transform_2, window_bounds = array<i64: 8, 128>}, {transform_indices = @transform_3, window_bounds = array<i64: 8, 8>}, {transform_indices = @transform_4, window_bounds = array<i64: 8, 1>}, {transform_indices = @transform_5, window_bounds = array<i64: 8, 128>}, {transform_indices = @transform_6, window_bounds = array<i64: 8, 1>}]} {
    %c0 = arith.constant 0 : index
    %c0_0 = arith.constant 0 : index
    %c0_1 = arith.constant 0 : index
    %0 = vector.load %arg1[%c0, %c0_0, %c0_1] : memref<8x1x128xf32, #tpu.memory_space<vmem>>, vector<8x1x128xf32>
    %1 = arith.truncf %0 : vector<8x1x128xf32> to vector<8x1x128xbf16>
    %c0_2 = arith.constant 0 : index
    %c0_3 = arith.constant 0 : index
    %c0_4 = arith.constant 0 : index
    %2 = vector.load %arg2[%c0_2, %c0_3, %c0_4] : memref<8x128x128xbf16, #tpu.memory_space<vmem>>, vector<8x128x128xbf16>
    %cst = arith.constant dense<0.000000e+00> : vector<8x1x128xf32>
    %3 = tpu.matmul %1, %2, %cst {dimension_numbers = #tpu.dot_dimension_numbers<[2], [2], [1], [1], [0, 0, 0, 1, 1, 1], [0], [0]>} : vector<8x1x128xbf16>, vector<8x128x128xbf16>, vector<8x1x128xf32> -> vector<8x1x128xf32>
    %4 = vector.shape_cast %3 : vector<8x1x128xf32> to vector<8x128xf32>
    %c0_5 = arith.constant 0 : index
    %c0_6 = arith.constant 0 : index
    %5 = vector.load %arg3[%c0_5, %c0_6] : memref<8x128xf32, #tpu.memory_space<vmem>>, vector<8x128xf32>
    %6 = arith.mulf %5, %4 : vector<8x128xf32>
    %7 = tpu.iota {dimensions = array<i32: 0>} : vector<128x8xi32>
    %8 = tpu.iota {dimensions = array<i32: 1>} : vector<128x8xi32>
    %c16_i32 = arith.constant 16 : i32
    %9 = vector.broadcast %c16_i32 : i32 to vector<128x8xi32>
    %10 = arith.muli %8, %9 : vector<128x8xi32>
    %11 = arith.cmpi sge, %7, %10 : vector<128x8xi32>
    %c16_i32_7 = arith.constant 16 : i32
    %12 = vector.broadcast %c16_i32_7 : i32 to vector<128x8xi32>
    %13 = arith.addi %10, %12 : vector<128x8xi32>
    %14 = arith.cmpi slt, %7, %13 : vector<128x8xi32>
    %15 = arith.andi %11, %14 : vector<128x8xi1>
    %16 = arith.extui %15 : vector<128x8xi1> to vector<128x8xi32>
    %17 = arith.sitofp %16 : vector<128x8xi32> to vector<128x8xf32>
    %cst_8 = arith.constant dense<0.000000e+00> : vector<8x8xf32>
    %18 = tpu.matmul %6, %17, %cst_8 {dimension_numbers = #tpu.dot_dimension_numbers<[1], [0], [0], [1], [0, 0, 1, 1], [], []>, precision = #tpu.contract_precision<fp32>} : vector<8x128xf32>, vector<128x8xf32>, vector<8x8xf32> -> vector<8x8xf32>
    %c0_9 = arith.constant 0 : index
    %c0_10 = arith.constant 0 : index
    %19 = vector.load %arg4[%c0_9, %c0_10] : memref<8x8xi32, #tpu.memory_space<vmem>>, vector<8x8xi32>
    %20 = tpu.iota {dimensions = array<i32: 2>} : vector<8x8x128xi32>
    %21 = vector.shape_cast %19 : vector<8x8xi32> to vector<8x8x1xi32>
    %22 = vector.broadcast %21 : vector<8x8x1xi32> to vector<8x8x128xi32>
    %23 = arith.cmpi eq, %22, %20 : vector<8x8x128xi32>
    %24 = arith.extui %23 : vector<8x8x128xi1> to vector<8x8x128xi32>
    %25 = arith.sitofp %24 : vector<8x8x128xi32> to vector<8x8x128xf32>
    %cst_11 = arith.constant dense<0.000000e+00> : vector<8x128xf32>
    %26 = vector.multi_reduction <add>, %25, %cst_11 [1] : vector<8x8x128xf32> to vector<8x128xf32>
    %27 = vector.shape_cast %18 : vector<8x8xf32> to vector<8x8x1xf32>
    %28 = vector.broadcast %27 : vector<8x8x1xf32> to vector<8x8x128xf32>
    %29 = arith.mulf %28, %25 : vector<8x8x128xf32>
    %cst_12 = arith.constant dense<0.000000e+00> : vector<8x128xf32>
    %30 = vector.multi_reduction <add>, %29, %cst_12 [1] : vector<8x8x128xf32> to vector<8x128xf32>
    %cst_13 = arith.constant 9.99999993E-9 : f32
    %31 = vector.broadcast %cst_13 : f32 to vector<8x128xf32>
    %32 = arith.addf %26, %31 : vector<8x128xf32>
    %33 = arith.divf %30, %32 : vector<8x128xf32>
    %c0_14 = arith.constant 0 : index
    %c0_15 = arith.constant 0 : index
    %34 = vector.load %arg6[%c0_14, %c0_15] : memref<8x128xf32, #tpu.memory_space<vmem>>, vector<8x128xf32>
    tpu.vector_store %arg6[%c0_14, %c0_15], %33 {strides = array<i32>} : memref<8x128xf32, #tpu.memory_space<vmem>>, vector<8x128xf32>,
    %c0_16 = arith.constant 0 : index
    %c0_17 = arith.constant 0 : index
    %35 = vector.load %arg5[%c0_16, %c0_17] : memref<8x1xi32, #tpu.memory_space<vmem>>, vector<8x1xi32>
    %c1_i32 = arith.constant 1 : i32
    %36 = vector.broadcast %c1_i32 : i32 to vector<8x1xi32>
    %37 = arith.subi %35, %36 : vector<8x1xi32>
    %c0_i32 = arith.constant 0 : i32
    %38 = vector.broadcast %c0_i32 : i32 to vector<8x1xi32>
    %39 = arith.maxsi %37, %38 : vector<8x1xi32>
    %40 = tpu.iota {dimensions = array<i32: 1>} : vector<8x128xi32>
    %c8_i32 = arith.constant 8 : i32
    %41 = vector.broadcast %c8_i32 : i32 to vector<8x128xi32>
    %42 = arith.cmpi slt, %40, %41 : vector<8x128xi32>
    %cst_18 = arith.constant -1.000000e+30 : f32
    %43 = vector.broadcast %cst_18 : f32 to vector<8x128xf32>
    %44 = arith.select %42, %33, %43 : vector<8x128xi1>, vector<8x128xf32>
    %cst_19 = arith.constant dense<0xFF800000> : vector<8xf32>
    %45 = vector.multi_reduction <maximumf>, %44, %cst_19 [1] : vector<8x128xf32> to vector<8xf32>
    %46 = vector.shape_cast %45 : vector<8xf32> to vector<8x1xf32>
    %47 = vector.broadcast %46 : vector<8x1xf32> to vector<8x128xf32>
    %48 = arith.subf %33, %47 : vector<8x128xf32>
    %49 = math.exp %48 : vector<8x128xf32>
    %cst_20 = arith.constant 0.000000e+00 : f32
    %50 = vector.broadcast %cst_20 : f32 to vector<8x128xf32>
    %51 = arith.select %42, %49, %50 : vector<8x128xi1>, vector<8x128xf32>
    %cst_21 = arith.constant dense<0.000000e+00> : vector<8xf32>
    %52 = vector.multi_reduction <add>, %51, %cst_21 [1] : vector<8x128xf32> to vector<8xf32>
    %53 = vector.shape_cast %52 : vector<8xf32> to vector<8x1xf32>
    %54 = math.log %53 : vector<8x1xf32>
    %55 = arith.addf %54, %46 : vector<8x1xf32>
    %56 = vector.broadcast %55 : vector<8x1xf32> to vector<8x128xf32>
    %57 = arith.subf %33, %56 : vector<8x128xf32>
    %58 = vector.broadcast %39 : vector<8x1xi32> to vector<8x128xi32>
    %59 = arith.cmpi eq, %40, %58 : vector<8x128xi32>
    %60 = arith.extui %59 : vector<8x128xi1> to vector<8x128xi32>
    %61 = arith.sitofp %60 : vector<8x128xi32> to vector<8x128xf32>
    %62 = arith.mulf %61, %57 : vector<8x128xf32>
    %cst_22 = arith.constant dense<0.000000e+00> : vector<8xf32>
    %63 = vector.multi_reduction <add>, %62, %cst_22 [1] : vector<8x128xf32> to vector<8xf32>
    %64 = vector.shape_cast %63 : vector<8xf32> to vector<8x1xf32>
    %cst_23 = arith.constant 0.000000e+00 : f32
    %65 = vector.broadcast %cst_23 : f32 to vector<8x1xf32>
    %66 = arith.subf %65, %64 : vector<8x1xf32>
    %c0_24 = arith.constant 0 : index
    %c0_25 = arith.constant 0 : index
    %67 = vector.load %arg7[%c0_24, %c0_25] : memref<8x1xf32, #tpu.memory_space<vmem>>, vector<8x1xf32>
    tpu.vector_store %arg7[%c0_24, %c0_25], %66 {strides = array<i32>} : memref<8x1xf32, #tpu.memory_space<vmem>>, vector<8x1xf32>,
    return
  }
  func.func @transform_0(%arg0: i32) -> (i32, i32, i32) {
    %c0_i32 = arith.constant 0 : i32
    %c0_i32_0 = arith.constant 0 : i32
    %c0_i32_1 = arith.constant 0 : i32
    return %arg0, %c0_i32, %c0_i32_0 : i32, i32, i32
  }
  func.func @transform_1(%arg0: i32) -> (i32, i32, i32) {
    %c0_i32 = arith.constant 0 : i32
    %c0_i32_0 = arith.constant 0 : i32
    %c0_i32_1 = arith.constant 0 : i32
    return %arg0, %c0_i32, %c0_i32_0 : i32, i32, i32
  }
  func.func @transform_2(%arg0: i32) -> (i32, i32) {
    %c0_i32 = arith.constant 0 : i32
    %c0_i32_0 = arith.constant 0 : i32
    return %arg0, %c0_i32 : i32, i32
  }
  func.func @transform_3(%arg0: i32) -> (i32, i32) {
    %c0_i32 = arith.constant 0 : i32
    %c0_i32_0 = arith.constant 0 : i32
    return %arg0, %c0_i32 : i32, i32
  }
  func.func @transform_4(%arg0: i32) -> (i32, i32) {
    %c0_i32 = arith.constant 0 : i32
    %c0_i32_0 = arith.constant 0 : i32
    return %arg0, %c0_i32 : i32, i32
  }
  func.func @transform_5(%arg0: i32) -> (i32, i32) {
    %c0_i32 = arith.constant 0 : i32
    %c0_i32_0 = arith.constant 0 : i32
    return %arg0, %c0_i32 : i32, i32
  }
  func.func @transform_6(%arg0: i32) -> (i32, i32) {
    %c0_i32 = arith.constant 0 : i32
    %c0_i32_0 = arith.constant 0 : i32
    return %arg0, %c0_i32 : i32, i32
  }
}

</mosaic_0001>

<llo_original>
// kernel: tpu_custom_call.1
$region0: #{tpu_custom_call.1}
  #allocation0 [shape = 'u32[]', space=smem, size = 0x4, offset = 0x4, fixed_abs, tag = 'smem constant byte address 0x4 - core index']
  #allocation1 [shape = 'u32[72,128]{1,0:T(1,128)}', space=vmem, size = 0x9000, scoped, tag = 'internal scratch']
  %s0 = inlined_call_operand.vmem [shape: f32[16,1,128], index: 0, kind: input, shape index: {}]
  %s1 = inlined_call_operand.hbm [shape: bf16[16,128,128], index: 1, kind: input, shape index: {}]
  %s2 = inlined_call_operand.vmem [shape: f32[16,128], index: 2, kind: input, shape index: {}]
  %s3 = inlined_call_operand.vmem [shape: s32[16,8], index: 3, kind: input, shape index: {}]
  %s4 = inlined_call_operand.vmem [shape: s32[16,1], index: 4, kind: input, shape index: {}]
  %s5 = inlined_call_operand.hbm [shape: f32[16,128], index: 5, kind: output, shape index: {0}]
  %s6 = inlined_call_operand.vmem [shape: f32[16,1], index: 6, kind: output, shape index: {1}]
  %7 = xla_tuple %s5, %s6
  %s8 = sld [smem:[#allocation0]]
  $region65: #{tpu_custom_call.1} parent=0
    _
  %s10 = ssub.s32 1, %s8
  %s11 = scalar_select 0, %s10, %s8
  $region1: #{tpu_custom_call.1} parent=0
    #allocation2 [shape = 'u8[524288]{0}', space=vmem, size = 0x80000, scoped, tag = 'input window, operand 1']
    #allocation3 [shape = 's32[2]{0}', space=sflag, size = 0x8, scoped, tag = 'scoped memory for tpu_custom_call.1']
    #allocation4 [shape = 's32[2]{0}', space=sflag, size = 0x8, scoped, tag = 'scoped memory for tpu_custom_call.1']
    #allocation5 [shape = 'u8[8192]{0}', space=vmem, size = 0x2000, scoped, tag = 'output window, operand 0']
    %12 = vsyncpa [#allocation3], 0
    %s13 = scalar_lea.sflag [#allocation3], 1
    %14 = vsyncpa %s13, 0
    %15 = vsyncpa [#allocation4], 0
    %s16 = scalar_lea.sflag [#allocation4], 1
    %17 = vsyncpa %s16, 0
    loop: start=0, step=1, limit=4
    $region2: #{tpu_custom_call.1} parent=1 // loop_pre_header
      _
    $region3: #{tpu_custom_call.1} parent=1 // loop_header
      %s19 = sphi 0, %s23
      %p20 = scmp.ge.s32.totalorder %s19, 4
      %s29 = sphi 0, %s31
      %s32 = sphi 0, %s29
      %s33 = sphi 0, %s32
      %s49 = sphi 0, %s33
      %s55 = sphi 0, %s57
      %s58 = sphi 0, %s55
      %s59 = sphi 0, %s58
      %s75 = sphi 0, %s59
      %s81 = sphi 0, %s83
      %s84 = sphi 0, %s81
      %s85 = sphi 0, %s84
      %s101 = sphi 0, %s85
      %s107 = sphi 0, %s109
      %s110 = sphi 0, %s107
      %s111 = sphi 0, %s110
      %s127 = sphi 0, %s111
      %s133 = sphi 0, %s135
      %s136 = sphi 0, %s133
      %s137 = sphi 0, %s136
      %s153 = sphi 0, %s137
      %s159 = sphi 0, %s161
      %s162 = sphi 0, %s159
      %s163 = sphi 0, %s162
      %s179 = sphi 0, %s163
      %s185 = sphi 0, %s187
      %s188 = sphi 0, %s185
      %s189 = sphi 0, %s188
      %s205 = sphi 0, %s189
    $region4: #{tpu_custom_call.1} parent=1 // loop_header_branch
      %22 = sbr.rel (%p20) target = $region8
    $region5: #{tpu_custom_call.1} parent=1 // loop_body
      %s24 = ssub.s32 %s19, 1
      %s25 = ssub.s32 %s19, 2
      %s26 = sadd.s32 %s19, 1
      %s27 = ssub.s32 %s19, %s26
      %p28 = scmp.eq.s32.totalorder %s27, 0
      %s30 = sadd.s32 %s29, 1
      %s31 = scalar_select %p28, %s29, %s30
      %p34 = pneg %p28
      %p35 = scmp.eq.s32.totalorder %s19, 1
      %p36 = por %p34, %p35
      %p37 = scmp.ne.s32.totalorder %s29, %s32
      %p38 = scmp.eq.s32.totalorder %s19, 0
      %p39 = por %p37, %p38
      %p40 = scmp.ne.s32.totalorder %s29, %s32
      %p41 = scmp.eq.s32.totalorder %s24, 1
      %p42 = por %p40, %p41
      %p43 = scmp.ne.s32.totalorder %s32, %s33
      %p44 = scmp.eq.s32.totalorder %s24, 0
      %p45 = por %p43, %p44
      %p46 = scmp.ne.s32.totalorder %s32, %s33
      %p47 = scmp.eq.s32.totalorder %s25, 1
      %p48 = por %p46, %p47
      %p50 = scmp.ne.s32.totalorder %s33, %s49
      %p51 = scmp.eq.s32.totalorder %s25, 0
      %p52 = por %p50, %p51
      %s53 = ssub.s32 %s19, %s26
      %p54 = scmp.eq.s32.totalorder %s53, 0
      %s56 = sadd.s32 %s55, 1
      %s57 = scalar_select %p54, %s55, %s56
      %p60 = pneg %p54
      %p61 = scmp.eq.s32.totalorder %s19, 1
      %p62 = por %p60, %p61
      %p63 = scmp.ne.s32.totalorder %s55, %s58
      %p64 = scmp.eq.s32.totalorder %s19, 0
      %p65 = por %p63, %p64
      %p66 = scmp.ne.s32.totalorder %s55, %s58
      %p67 = scmp.eq.s32.totalorder %s24, 1
      %p68 = por %p66, %p67
      %p69 = scmp.ne.s32.totalorder %s58, %s59
      %p70 = scmp.eq.s32.totalorder %s24, 0
      %p71 = por %p69, %p70
      %p72 = scmp.ne.s32.totalorder %s58, %s59
      %p73 = scmp.eq.s32.totalorder %s25, 1
      %p74 = por %p72, %p73
      %p76 = scmp.ne.s32.totalorder %s59, %s75
      %p77 = scmp.eq.s32.totalorder %s25, 0
      %p78 = por %p76, %p77
      %s79 = ssub.s32 %s19, %s26
      %p80 = scmp.eq.s32.totalorder %s79, 0
      %s82 = sadd.s32 %s81, 1
      %s83 = scalar_select %p80, %s81, %s82
      %p86 = pneg %p80
      %p87 = scmp.eq.s32.totalorder %s19, 1
      %p88 = por %p86, %p87
      %p89 = scmp.ne.s32.totalorder %s81, %s84
      %p90 = scmp.eq.s32.totalorder %s19, 0
      %p91 = por %p89, %p90
      %p92 = scmp.ne.s32.totalorder %s81, %s84
      %p93 = scmp.eq.s32.totalorder %s24, 1
      %p94 = por %p92, %p93
      %p95 = scmp.ne.s32.totalorder %s84, %s85
      %p96 = scmp.eq.s32.totalorder %s24, 0
      %p97 = por %p95, %p96
      %p98 = scmp.ne.s32.totalorder %s84, %s85
      %p99 = scmp.eq.s32.totalorder %s25, 1
      %p100 = por %p98, %p99
      %p102 = scmp.ne.s32.totalorder %s85, %s101
      %p103 = scmp.eq.s32.totalorder %s25, 0
      %p104 = por %p102, %p103
      %s105 = ssub.s32 %s19, %s26
      %p106 = scmp.eq.s32.totalorder %s105, 0
      %s108 = sadd.s32 %s107, 1
      %s109 = scalar_select %p106, %s107, %s108
      %p112 = pneg %p106
      %p113 = scmp.eq.s32.totalorder %s19, 1
      %p114 = por %p112, %p113
      %p115 = scmp.ne.s32.totalorder %s107, %s110
      %p116 = scmp.eq.s32.totalorder %s19, 0
      %p117 = por %p115, %p116
      %p118 = scmp.ne.s32.totalorder %s107, %s110
      %p119 = scmp.eq.s32.totalorder %s24, 1
      %p120 = por %p118, %p119
      %p121 = scmp.ne.s32.totalorder %s110, %s111
      %p122 = scmp.eq.s32.totalorder %s24, 0
      %p123 = por %p121, %p122
      %p124 = scmp.ne.s32.totalorder %s110, %s111
      %p125 = scmp.eq.s32.totalorder %s25, 1
      %p126 = por %p124, %p125
      %p128 = scmp.ne.s32.totalorder %s111, %s127
      %p129 = scmp.eq.s32.totalorder %s25, 0
      %p130 = por %p128, %p129
      %s131 = ssub.s32 %s19, %s26
      %p132 = scmp.eq.s32.totalorder %s131, 0
      %s134 = sadd.s32 %s133, 1
      %s135 = scalar_select %p132, %s133, %s134
      %p138 = pneg %p132
      %p139 = scmp.eq.s32.totalorder %s19, 1
      %p140 = por %p138, %p139
      %p141 = scmp.ne.s32.totalorder %s133, %s136
      %p142 = scmp.eq.s32.totalorder %s19, 0
      %p143 = por %p141, %p142
      %p144 = scmp.ne.s32.totalorder %s133, %s136
      %p145 = scmp.eq.s32.totalorder %s24, 1
      %p146 = por %p144, %p145
      %p147 = scmp.ne.s32.totalorder %s136, %s137
      %p148 = scmp.eq.s32.totalorder %s24, 0
      %p149 = por %p147, %p148
      %p150 = scmp.ne.s32.totalorder %s136, %s137
      %p151 = scmp.eq.s32.totalorder %s25, 1
      %p152 = por %p150, %p151
      %p154 = scmp.ne.s32.totalorder %s137, %s153
      %p155 = scmp.eq.s32.totalorder %s25, 0
      %p156 = por %p154, %p155
      %s157 = ssub.s32 %s19, %s26
      %p158 = scmp.eq.s32.totalorder %s157, 0
      %s160 = sadd.s32 %s159, 1
      %s161 = scalar_select %p158, %s159, %s160
      %p164 = pneg %p158
      %p165 = scmp.eq.s32.totalorder %s19, 1
      %p166 = por %p164, %p165
      %p167 = scmp.ne.s32.totalorder %s159, %s162
      %p168 = scmp.eq.s32.totalorder %s19, 0
      %p169 = por %p167, %p168
      %p170 = scmp.ne.s32.totalorder %s159, %s162
      %p171 = scmp.eq.s32.totalorder %s24, 1
      %p172 = por %p170, %p171
      %p173 = scmp.ne.s32.totalorder %s162, %s163
      %p174 = scmp.eq.s32.totalorder %s24, 0
      %p175 = por %p173, %p174
      %p176 = scmp.ne.s32.totalorder %s162, %s163
      %p177 = scmp.eq.s32.totalorder %s25, 1
      %p178 = por %p176, %p177
      %p180 = scmp.ne.s32.totalorder %s163, %s179
      %p181 = scmp.eq.s32.totalorder %s25, 0
      %p182 = por %p180, %p181
      %s183 = ssub.s32 %s19, %s26
      %p184 = scmp.eq.s32.totalorder %s183, 0
      %s186 = sadd.s32 %s185, 1
      %s187 = scalar_select %p184, %s185, %s186
      %p190 = pneg %p184
      %p191 = scmp.eq.s32.totalorder %s19, 1
      %p192 = por %p190, %p191
      %p193 = scmp.ne.s32.totalorder %s185, %s188
      %p194 = scmp.eq.s32.totalorder %s19, 0
      %p195 = por %p193, %p194
      %p196 = scmp.ne.s32.totalorder %s185, %s188
      %p197 = scmp.eq.s32.totalorder %s24, 1
      %p198 = por %p196, %p197
      %p199 = scmp.ne.s32.totalorder %s188, %s189
      %p200 = scmp.eq.s32.totalorder %s24, 0
      %p201 = por %p199, %p200
      %p202 = scmp.ne.s32.totalorder %s188, %s189
      %p203 = scmp.eq.s32.totalorder %s25, 1
      %p204 = por %p202, %p203
      %p206 = scmp.ne.s32.totalorder %s189, %s205
      %p207 = scmp.eq.s32.totalorder %s25, 0
      %p208 = por %p206, %p207
      %p209 = scmp.le.s32.totalorder 1, %s19
      %p210 = scmp.lt.s32.totalorder %s19, 3
      %p211 = pnand %p209, %p210
      %p212 = pneg %p211
      // Predicated region
      $region9: #{tpu_custom_call.1} parent=5 // pred_check
        _
      $region10: #{tpu_custom_call.1} parent=5 // pred_check_branch
        %214 = sbr.rel (%p211) target = $region12
      $region11: #{tpu_custom_call.1} parent=5 // pred_region
        %s215 = ssub.s32 %s19, 1
      $region12: #{tpu_custom_call.1} parent=5 // pred_fallthru
        _
      %p216 = scmp.lt.s32.totalorder %s19, 2
      // Predicated region
      $region13: #{tpu_custom_call.1} parent=5 // pred_check
        %p217 = pneg %p216
      $region14: #{tpu_custom_call.1} parent=5 // pred_check_branch
        %219 = sbr.rel (%p217) target = $region16
      $region15: #{tpu_custom_call.1} parent=5 // pred_region
        // Predicated region
        $region17: #{tpu_custom_call.1} parent=15 // pred_check
          %p220 = pneg %p39
        $region18: #{tpu_custom_call.1} parent=15 // pred_check_branch
          %222 = sbr.rel (%p220) target = $region20
        $region19: #{tpu_custom_call.1} parent=15 // pred_region
          %s223 = smul.u32 8, %s19
          %p224 = scmp.lt.s32.totalorder %s223, 15
          %s225 = scalar_select %p224, %s223, 15
          %s226 = scalar_lea.vmem %s0, %s225
          %s227 = smul.u32 8, %s19
        $region20: #{tpu_custom_call.1} parent=15 // pred_fallthru
          _
        // Predicated region
        $region21: #{tpu_custom_call.1} parent=15 // pred_check
          %p228 = pneg %p65
        $region22: #{tpu_custom_call.1} parent=15 // pred_check_branch
          %230 = sbr.rel (%p228) target = $region24
        $region23: #{tpu_custom_call.1} parent=15 // pred_region
          %s231 = sand.u32 %s55, 1
          %s232 = scalar_lea.sflag [#allocation3], %s231
          %s233 = sand.u32 %s55, 1
          %s234 = smul.addr %s233, 512
          %s235 = scalar_lea.vmem [#allocation2], %s234
          %s236 = smul.u32 8, %s19
          %238 = vsyncadd %s232, 0
          %s239 = smul.addr %s236, 16
          %s240 = smul.addr %s239, 4
          %s241 = scalar_lea.hbm %s1, %s240
          %s242 = sshll.u32 %s241, 4
          %s243 = int_to_ptr.hbm [resolvable:$true] %s242
          %s244 = sshll.u32 %s235, 4
          %s245 = int_to_ptr.vmem [resolvable:$true] %s244
          %250 = dma.hbm_to_vmem [thread:$0]  %s243, 8192, %s245, %s232, 64, 64, 4
        $region24: #{tpu_custom_call.1} parent=15 // pred_fallthru
          _
        // Predicated region
        $region25: #{tpu_custom_call.1} parent=15 // pred_check
          %p251 = pneg %p91
        $region26: #{tpu_custom_call.1} parent=15 // pred_check_branch
          %253 = sbr.rel (%p251) target = $region28
        $region27: #{tpu_custom_call.1} parent=15 // pred_region
          %p254 = scmp.lt.s32.totalorder %s19, 1
          %s255 = scalar_select %p254, %s19, 1
          %s256 = smul.addr %s255, 8
          %s257 = scalar_lea.vmem %s2, %s256
        $region28: #{tpu_custom_call.1} parent=15 // pred_fallthru
          _
        // Predicated region
        $region29: #{tpu_custom_call.1} parent=15 // pred_check
          %p258 = pneg %p117
        $region30: #{tpu_custom_call.1} parent=15 // pred_check_branch
          %260 = sbr.rel (%p258) target = $region32
        $region31: #{tpu_custom_call.1} parent=15 // pred_region
          %p261 = scmp.lt.s32.totalorder %s19, 1
          %s262 = scalar_select %p261, %s19, 1
          %s263 = smul.addr %s262, 8
          %s264 = scalar_lea.vmem %s3, %s263
        $region32: #{tpu_custom_call.1} parent=15 // pred_fallthru
          _
        // Predicated region
        $region33: #{tpu_custom_call.1} parent=15 // pred_check
          %p265 = pneg %p143
        $region34: #{tpu_custom_call.1} parent=15 // pred_check_branch
          %267 = sbr.rel (%p265) target = $region36
        $region35: #{tpu_custom_call.1} parent=15 // pred_region
          %p268 = scmp.lt.s32.totalorder %s19, 1
          %s269 = scalar_select %p268, %s19, 1
          %s270 = smul.addr %s269, 8
          %s271 = scalar_lea.vmem %s4, %s270
        $region36: #{tpu_custom_call.1} parent=15 // pred_fallthru
          _
      $region16: #{tpu_custom_call.1} parent=5 // pred_fallthru
        _
      %p272 = scmp.le.s32.totalorder 1, %s19
      %p273 = scmp.lt.s32.totalorder %s19, 3
      %p274 = pnand %p272, %p273
      %p275 = pneg %p274
      // Predicated region
      $region37: #{tpu_custom_call.1} parent=5 // pred_check
        _
      $region38: #{tpu_custom_call.1} parent=5 // pred_check_branch
        %277 = sbr.rel (%p274) target = $region40
      $region39: #{tpu_custom_call.1} parent=5 // pred_region
        %s278 = ssub.s32 %s19, 1
        %s279 = sand.u32 %s58, 1
        %s280 = scalar_lea.sflag [#allocation3], %s279
        %s281 = sand.u32 %s58, 1
        %s282 = smul.addr %s281, 512
        %s283 = scalar_lea.vmem [#allocation2], %s282
        // Predicated region
        $region41: #{tpu_custom_call.1} parent=39 // pred_check
          %p284 = pneg %p71
        $region42: #{tpu_custom_call.1} parent=39 // pred_check_branch
          %286 = sbr.rel (%p284) target = $region44
        $region43: #{tpu_custom_call.1} parent=39 // pred_region
          %288 = dma.done %s280, 8192
        $region44: #{tpu_custom_call.1} parent=39 // pred_fallthru
          _
        %s289 = smul.u32 8, %s24
        %p290 = scmp.lt.s32.totalorder %s289, 15
        %s291 = scalar_select %p290, %s289, 15
        %s292 = scalar_lea.vmem %s0, %s291
        %p293 = pneg %p45
        %p294 = pneg %p42
        %s295 = sand.u32 %s58, 1
        %s296 = scalar_lea.sflag [#allocation3], %s295
        %s297 = sand.u32 %s58, 1
        %s298 = smul.addr %s297, 512
        %s299 = scalar_lea.vmem [#allocation2], %s298
        %p300 = pneg %p71
        %p301 = pneg %p68
        %p302 = scmp.lt.s32.totalorder %s24, 1
        %s303 = scalar_select %p302, %s24, 1
        %s304 = smul.addr %s303, 8
        %s305 = scalar_lea.vmem %s2, %s304
        %p306 = pneg %p97
        %p307 = pneg %p94
        %p308 = scmp.lt.s32.totalorder %s24, 1
        %s309 = scalar_select %p308, %s24, 1
        %s310 = smul.addr %s309, 8
        %s311 = scalar_lea.vmem %s3, %s310
        %p312 = pneg %p123
        %p313 = pneg %p120
        %p314 = scmp.lt.s32.totalorder %s24, 1
        %s315 = scalar_select %p314, %s24, 1
        %s316 = smul.addr %s315, 8
        %s317 = scalar_lea.vmem %s4, %s316
        %p318 = pneg %p149
        %p319 = pneg %p146
        %p320 = pneg %p175
        %p321 = pneg %p172
        %s322 = sand.u32 %s162, 1
        %s323 = scalar_lea.sflag [#allocation4], %s322
        %s324 = sand.u32 %s162, 1
        %s325 = smul.addr %s324, 8
        %s326 = scalar_lea.vmem [#allocation5], %s325
        %p327 = pneg %p201
        %p328 = pneg %p198
        %p329 = scmp.lt.s32.totalorder %s24, 1
        %s330 = scalar_select %p329, %s24, 1
        %s331 = smul.addr %s330, 8
        %s332 = scalar_lea.vmem %s6, %s331
        %s333 = smul.u32 8, %s24
        %p334 = scmp.lt.s32.totalorder %s333, 15
        %s335 = scalar_select %p334, %s333, 15
        %s336 = scalar_lea.vmem %s0, %s335
        %s337 = smul.u32 8, %s24
        %s338 = smul.u32 8, %s24
        %p339 = scmp.lt.s32.totalorder %s24, 1
        %s340 = scalar_select %p339, %s24, 1
        %s341 = smul.addr %s340, 8
        %s342 = scalar_lea.vmem %s2, %s341
        %p343 = scmp.lt.s32.totalorder %s24, 1
        %s344 = scalar_select %p343, %s24, 1
        %s345 = smul.addr %s344, 8
        %s346 = scalar_lea.vmem %s3, %s345
        %p347 = scmp.lt.s32.totalorder %s24, 1
        %s348 = scalar_select %p347, %s24, 1
        %s349 = smul.addr %s348, 8
        %s350 = scalar_lea.vmem %s4, %s349
        %p351 = scmp.lt.s32.totalorder %s24, 1
        %s352 = scalar_select %p351, %s24, 1
        %s353 = smul.addr %s352, 8
        %s354 = scalar_lea.vmem %s6, %s353
        %v355 = vld [vmem:[%s336] sm:$0x1]
        %v356 = vld [vmem:[%s336 + $0x1] sm:$0x1]
        %v357 = vld [vmem:[%s336 + $0x2] sm:$0x1]
        %v358 = vld [vmem:[%s336 + $0x3] sm:$0x1]
        %v359 = vld [vmem:[%s336 + $0x4] sm:$0x1]
        %v360 = vld [vmem:[%s336 + $0x5] sm:$0x1]
        %v361 = vld [vmem:[%s336 + $0x6] sm:$0x1]
        %v362 = vld [vmem:[%s336 + $0x7] sm:$0x1]
        %v363 = vpack.c.bf16 %v355, %v355
        %v364 = vpack.c.bf16 %v356, %v356
        %v365 = vpack.c.bf16 %v357, %v357
        %v366 = vpack.c.bf16 %v358, %v358
        %v367 = vpack.c.bf16 %v359, %v359
        %v368 = vpack.c.bf16 %v360, %v360
        %v369 = vpack.c.bf16 %v361, %v361
        %v370 = vpack.c.bf16 %v362, %v362
        %v371 = vld [vmem:[%s283] sm:$0xf]
        %v372 = vld [vmem:[%s283 + $0x4] sm:$0xf]
        %v373 = vld [vmem:[%s283 + $0x8] sm:$0xf]
        %v374 = vld [vmem:[%s283 + $0xc] sm:$0xf]
        %v375 = vld [vmem:[%s283 + $0x10] sm:$0xf]
        %v376 = vld [vmem:[%s283 + $0x14] sm:$0xf]
        %v377 = vld [vmem:[%s283 + $0x18] sm:$0xf]
        %v378 = vld [vmem:[%s283 + $0x1c] sm:$0xf]
        %v379 = vld [vmem:[%s283 + $0x20] sm:$0xf]
        %v380 = vld [vmem:[%s283 + $0x24] sm:$0xf]
        %v381 = vld [vmem:[%s283 + $0x28] sm:$0xf]
        %v382 = vld [vmem:[%s283 + $0x2c] sm:$0xf]
        %v383 = vld [vmem:[%s283 + $0x30] sm:$0xf]
        %v384 = vld [vmem:[%s283 + $0x34] sm:$0xf]
        %v385 = vld [vmem:[%s283 + $0x38] sm:$0xf]
        %v386 = vld [vmem:[%s283 + $0x3c] sm:$0xf]
        %v387 = vld [vmem:[%s283 + $0x40] sm:$0xf]
        %v388 = vld [vmem:[%s283 + $0x44] sm:$0xf]
        %v389 = vld [vmem:[%s283 + $0x48] sm:$0xf]
        %v390 = vld [vmem:[%s283 + $0x4c] sm:$0xf]
        %v391 = vld [vmem:[%s283 + $0x50] sm:$0xf]
        %v392 = vld [vmem:[%s283 + $0x54] sm:$0xf]
        %v393 = vld [vmem:[%s283 + $0x58] sm:$0xf]
        %v394 = vld [vmem:[%s283 + $0x5c] sm:$0xf]
        %v395 = vld [vmem:[%s283 + $0x60] sm:$0xf]
        %v396 = vld [vmem:[%s283 + $0x64] sm:$0xf]
        %v397 = vld [vmem:[%s283 + $0x68] sm:$0xf]
        %v398 = vld [vmem:[%s283 + $0x6c] sm:$0xf]
        %v399 = vld [vmem:[%s283 + $0x70] sm:$0xf]
        %v400 = vld [vmem:[%s283 + $0x74] sm:$0xf]
        %v401 = vld [vmem:[%s283 + $0x78] sm:$0xf]
        %v402 = vld [vmem:[%s283 + $0x7c] sm:$0xf]
        %v403 = vld [vmem:[%s283 + $0x80] sm:$0xf]
        %v404 = vld [vmem:[%s283 + $0x84] sm:$0xf]
        %v405 = vld [vmem:[%s283 + $0x88] sm:$0xf]
        %v406 = vld [vmem:[%s283 + $0x8c] sm:$0xf]
        %v407 = vld [vmem:[%s283 + $0x90] sm:$0xf]
        %v408 = vld [vmem:[%s283 + $0x94] sm:$0xf]
        %v409 = vld [vmem:[%s283 + $0x98] sm:$0xf]
        %v410 = vld [vmem:[%s283 + $0x9c] sm:$0xf]
        %v411 = vld [vmem:[%s283 + $0xa0] sm:$0xf]
        %v412 = vld [vmem:[%s283 + $0xa4] sm:$0xf]
        %v413 = vld [vmem:[%s283 + $0xa8] sm:$0xf]
        %v414 = vld [vmem:[%s283 + $0xac] sm:$0xf]
        %v415 = vld [vmem:[%s283 + $0xb0] sm:$0xf]
        %v416 = vld [vmem:[%s283 + $0xb4] sm:$0xf]
        %v417 = vld [vmem:[%s283 + $0xb8] sm:$0xf]
        %v418 = vld [vmem:[%s283 + $0xbc] sm:$0xf]
        %v419 = vld [vmem:[%s283 + $0xc0] sm:$0xf]
        %v420 = vld [vmem:[%s283 + $0xc4] sm:$0xf]
        %v421 = vld [vmem:[%s283 + $0xc8] sm:$0xf]
        %v422 = vld [vmem:[%s283 + $0xcc] sm:$0xf]
        %v423 = vld [vmem:[%s283 + $0xd0] sm:$0xf]
        %v424 = vld [vmem:[%s283 + $0xd4] sm:$0xf]
        %v425 = vld [vmem:[%s283 + $0xd8] sm:$0xf]
        %v426 = vld [vmem:[%s283 + $0xdc] sm:$0xf]
        %v427 = vld [vmem:[%s283 + $0xe0] sm:$0xf]
        %v428 = vld [vmem:[%s283 + $0xe4] sm:$0xf]
        %v429 = vld [vmem:[%s283 + $0xe8] sm:$0xf]
        %v430 = vld [vmem:[%s283 + $0xec] sm:$0xf]
        %v431 = vld [vmem:[%s283 + $0xf0] sm:$0xf]
        %v432 = vld [vmem:[%s283 + $0xf4] sm:$0xf]
        %v433 = vld [vmem:[%s283 + $0xf8] sm:$0xf]
        %v434 = vld [vmem:[%s283 + $0xfc] sm:$0xf]
        %v435 = vld [vmem:[%s283 + $0x100] sm:$0xf]
        %v436 = vld [vmem:[%s283 + $0x104] sm:$0xf]
        %v437 = vld [vmem:[%s283 + $0x108] sm:$0xf]
        %v438 = vld [vmem:[%s283 + $0x10c] sm:$0xf]
        %v439 = vld [vmem:[%s283 + $0x110] sm:$0xf]
        %v440 = vld [vmem:[%s283 + $0x114] sm:$0xf]
        %v441 = vld [vmem:[%s283 + $0x118] sm:$0xf]
        %v442 = vld [vmem:[%s283 + $0x11c] sm:$0xf]
        %v443 = vld [vmem:[%s283 + $0x120] sm:$0xf]
        %v444 = vld [vmem:[%s283 + $0x124] sm:$0xf]
        %v445 = vld [vmem:[%s283 + $0x128] sm:$0xf]
        %v446 = vld [vmem:[%s283 + $0x12c] sm:$0xf]
        %v447 = vld [vmem:[%s283 + $0x130] sm:$0xf]
        %v448 = vld [vmem:[%s283 + $0x134] sm:$0xf]
        %v449 = vld [vmem:[%s283 + $0x138] sm:$0xf]
        %v450 = vld [vmem:[%s283 + $0x13c] sm:$0xf]
        %v451 = vld [vmem:[%s283 + $0x140] sm:$0xf]
        %v452 = vld [vmem:[%s283 + $0x144] sm:$0xf]
        %v453 = vld [vmem:[%s283 + $0x148] sm:$0xf]
        %v454 = vld [vmem:[%s283 + $0x14c] sm:$0xf]
        %v455 = vld [vmem:[%s283 + $0x150] sm:$0xf]
        %v456 = vld [vmem:[%s283 + $0x154] sm:$0xf]
        %v457 = vld [vmem:[%s283 + $0x158] sm:$0xf]
        %v458 = vld [vmem:[%s283 + $0x15c] sm:$0xf]
        %v459 = vld [vmem:[%s283 + $0x160] sm:$0xf]
        %v460 = vld [vmem:[%s283 + $0x164] sm:$0xf]
        %v461 = vld [vmem:[%s283 + $0x168] sm:$0xf]
        %v462 = vld [vmem:[%s283 + $0x16c] sm:$0xf]
        %v463 = vld [vmem:[%s283 + $0x170] sm:$0xf]
        %v464 = vld [vmem:[%s283 + $0x174] sm:$0xf]
        %v465 = vld [vmem:[%s283 + $0x178] sm:$0xf]
        %v466 = vld [vmem:[%s283 + $0x17c] sm:$0xf]
        %v467 = vld [vmem:[%s283 + $0x180] sm:$0xf]
        %v468 = vld [vmem:[%s283 + $0x184] sm:$0xf]
        %v469 = vld [vmem:[%s283 + $0x188] sm:$0xf]
        %v470 = vld [vmem:[%s283 + $0x18c] sm:$0xf]
        %v471 = vld [vmem:[%s283 + $0x190] sm:$0xf]
        %v472 = vld [vmem:[%s283 + $0x194] sm:$0xf]
        %v473 = vld [vmem:[%s283 + $0x198] sm:$0xf]
        %v474 = vld [vmem:[%s283 + $0x19c] sm:$0xf]
        %v475 = vld [vmem:[%s283 + $0x1a0] sm:$0xf]
        %v476 = vld [vmem:[%s283 + $0x1a4] sm:$0xf]
        %v477 = vld [vmem:[%s283 + $0x1a8] sm:$0xf]
        %v478 = vld [vmem:[%s283 + $0x1ac] sm:$0xf]
        %v479 = vld [vmem:[%s283 + $0x1b0] sm:$0xf]
        %v480 = vld [vmem:[%s283 + $0x1b4] sm:$0xf]
        %v481 = vld [vmem:[%s283 + $0x1b8] sm:$0xf]
        %v482 = vld [vmem:[%s283 + $0x1bc] sm:$0xf]
        %v483 = vld [vmem:[%s283 + $0x1c0] sm:$0xf]
        %v484 = vld [vmem:[%s283 + $0x1c4] sm:$0xf]
        %v485 = vld [vmem:[%s283 + $0x1c8] sm:$0xf]
        %v486 = vld [vmem:[%s283 + $0x1cc] sm:$0xf]
        %v487 = vld [vmem:[%s283 + $0x1d0] sm:$0xf]
        %v488 = vld [vmem:[%s283 + $0x1d4] sm:$0xf]
        %v489 = vld [vmem:[%s283 + $0x1d8] sm:$0xf]
        %v490 = vld [vmem:[%s283 + $0x1dc] sm:$0xf]
        %v491 = vld [vmem:[%s283 + $0x1e0] sm:$0xf]
        %v492 = vld [vmem:[%s283 + $0x1e4] sm:$0xf]
        %v493 = vld [vmem:[%s283 + $0x1e8] sm:$0xf]
        %v494 = vld [vmem:[%s283 + $0x1ec] sm:$0xf]
        %v495 = vld [vmem:[%s283 + $0x1f0] sm:$0xf]
        %v496 = vld [vmem:[%s283 + $0x1f4] sm:$0xf]
        %v497 = vld [vmem:[%s283 + $0x1f8] sm:$0xf]
        %v498 = vld [vmem:[%s283 + $0x1fc] sm:$0xf]
        %v515 = vunpack.c.l.b16 %v371
        %v516 = vunpack.c.l.b16 %v372
        %v517 = vunpack.c.l.b16 %v373
        %v518 = vunpack.c.l.b16 %v374
        %v519 = vunpack.c.l.b16 %v375
        %v520 = vunpack.c.l.b16 %v376
        %v521 = vunpack.c.l.b16 %v377
        %v522 = vunpack.c.l.b16 %v378
        %v523 = vunpack.c.l.b16 %v379
        %v524 = vunpack.c.l.b16 %v380
        %v525 = vunpack.c.l.b16 %v381
        %v526 = vunpack.c.l.b16 %v382
        %v527 = vunpack.c.l.b16 %v383
        %v528 = vunpack.c.l.b16 %v384
        %v529 = vunpack.c.l.b16 %v385
        %v530 = vunpack.c.l.b16 %v386
        %v531 = vpack.c.b16 %v516, %v515
        %v532 = vpack.c.b16 %v518, %v517
        %v533 = vpack.c.b16 %v520, %v519
        %v534 = vpack.c.b16 %v522, %v521
        %v535 = vpack.c.b16 %v524, %v523
        %v536 = vpack.c.b16 %v526, %v525
        %v537 = vpack.c.b16 %v528, %v527
        %v538 = vpack.c.b16 %v530, %v529
        %547 = vmatpush.bf16.xpose.msra.mxu0 %v538
        %548 = vmatpush.bf16.xpose.msra.mxu0 %v537
        %549 = vmatpush.bf16.xpose.msra.mxu0 %v536
        %550 = vmatpush.bf16.xpose.msra.mxu0 %v535
        %551 = vmatpush.bf16.xpose.msra.mxu0 %v534
        %552 = vmatpush.bf16.xpose.msra.mxu0 %v533
        %553 = vmatpush.bf16.xpose.msra.mxu0 %v532
        %554 = vmatpush.bf16.xpose.msra.mxu0 %v531
        %555 = vmatmul.bf16.gmra.mxu0 %v363
        %v556 = vpop.f32.mrf.mxu0
        %v557 = vadd.f32 0.0, %v556
        %v558 = vpop.f32.mrf.mxu0
        %559 = vdwg.mxu0
        %v576 = vunpack.c.l.b16 %v387
        %v577 = vunpack.c.l.b16 %v388
        %v578 = vunpack.c.l.b16 %v389
        %v579 = vunpack.c.l.b16 %v390
        %v580 = vunpack.c.l.b16 %v391
        %v581 = vunpack.c.l.b16 %v392
        %v582 = vunpack.c.l.b16 %v393
        %v583 = vunpack.c.l.b16 %v394
        %v584 = vunpack.c.l.b16 %v395
        %v585 = vunpack.c.l.b16 %v396
        %v586 = vunpack.c.l.b16 %v397
        %v587 = vunpack.c.l.b16 %v398
        %v588 = vunpack.c.l.b16 %v399
        %v589 = vunpack.c.l.b16 %v400
        %v590 = vunpack.c.l.b16 %v401
        %v591 = vunpack.c.l.b16 %v402
        %v592 = vpack.c.b16 %v577, %v576
        %v593 = vpack.c.b16 %v579, %v578
        %v594 = vpack.c.b16 %v581, %v580
        %v595 = vpack.c.b16 %v583, %v582
        %v596 = vpack.c.b16 %v585, %v584
        %v597 = vpack.c.b16 %v587, %v586
        %v598 = vpack.c.b16 %v589, %v588
        %v599 = vpack.c.b16 %v591, %v590
        %608 = vmatpush.bf16.xpose.msra.mxu0 %v599
        %609 = vmatpush.bf16.xpose.msra.mxu0 %v598
        %610 = vmatpush.bf16.xpose.msra.mxu0 %v597
        %611 = vmatpush.bf16.xpose.msra.mxu0 %v596
        %612 = vmatpush.bf16.xpose.msra.mxu0 %v595
        %613 = vmatpush.bf16.xpose.msra.mxu0 %v594
        %614 = vmatpush.bf16.xpose.msra.mxu0 %v593
        %615 = vmatpush.bf16.xpose.msra.mxu0 %v592
        %616 = vmatmul.bf16.gmra.mxu0 %v364
        %v617 = vpop.f32.mrf.mxu0
        %v618 = vadd.f32 0.0, %v617
        %v619 = vpop.f32.mrf.mxu0
        %620 = vdwg.mxu0
        %v637 = vunpack.c.l.b16 %v403
        %v638 = vunpack.c.l.b16 %v404
        %v639 = vunpack.c.l.b16 %v405
        %v640 = vunpack.c.l.b16 %v406
        %v641 = vunpack.c.l.b16 %v407
        %v642 = vunpack.c.l.b16 %v408
        %v643 = vunpack.c.l.b16 %v409
        %v644 = vunpack.c.l.b16 %v410
        %v645 = vunpack.c.l.b16 %v411
        %v646 = vunpack.c.l.b16 %v412
        %v647 = vunpack.c.l.b16 %v413
        %v648 = vunpack.c.l.b16 %v414
        %v649 = vunpack.c.l.b16 %v415
        %v650 = vunpack.c.l.b16 %v416
        %v651 = vunpack.c.l.b16 %v417
        %v652 = vunpack.c.l.b16 %v418
        %v653 = vpack.c.b16 %v638, %v637
        %v654 = vpack.c.b16 %v640, %v639
        %v655 = vpack.c.b16 %v642, %v641
        %v656 = vpack.c.b16 %v644, %v643
        %v657 = vpack.c.b16 %v646, %v645
        %v658 = vpack.c.b16 %v648, %v647
        %v659 = vpack.c.b16 %v650, %v649
        %v660 = vpack.c.b16 %v652, %v651
        %669 = vmatpush.bf16.xpose.msra.mxu0 %v660
        %670 = vmatpush.bf16.xpose.msra.mxu0 %v659
        %671 = vmatpush.bf16.xpose.msra.mxu0 %v658
        %672 = vmatpush.bf16.xpose.msra.mxu0 %v657
        %673 = vmatpush.bf16.xpose.msra.mxu0 %v656
        %674 = vmatpush.bf16.xpose.msra.mxu0 %v655
        %675 = vmatpush.bf16.xpose.msra.mxu0 %v654
        %676 = vmatpush.bf16.xpose.msra.mxu0 %v653
        %677 = vmatmul.bf16.gmra.mxu0 %v365
        %v678 = vpop.f32.mrf.mxu0
        %v679 = vadd.f32 0.0, %v678
        %v680 = vpop.f32.mrf.mxu0
        %681 = vdwg.mxu0
        %v698 = vunpack.c.l.b16 %v419
        %v699 = vunpack.c.l.b16 %v420
        %v700 = vunpack.c.l.b16 %v421
        %v701 = vunpack.c.l.b16 %v422
        %v702 = vunpack.c.l.b16 %v423
        %v703 = vunpack.c.l.b16 %v424
        %v704 = vunpack.c.l.b16 %v425
        %v705 = vunpack.c.l.b16 %v426
        %v706 = vunpack.c.l.b16 %v427
        %v707 = vunpack.c.l.b16 %v428
        %v708 = vunpack.c.l.b16 %v429
        %v709 = vunpack.c.l.b16 %v430
        %v710 = vunpack.c.l.b16 %v431
        %v711 = vunpack.c.l.b16 %v432
        %v712 = vunpack.c.l.b16 %v433
        %v713 = vunpack.c.l.b16 %v434
        %v714 = vpack.c.b16 %v699, %v698
        %v715 = vpack.c.b16 %v701, %v700
        %v716 = vpack.c.b16 %v703, %v702
        %v717 = vpack.c.b16 %v705, %v704
        %v718 = vpack.c.b16 %v707, %v706
        %v719 = vpack.c.b16 %v709, %v708
        %v720 = vpack.c.b16 %v711, %v710
        %v721 = vpack.c.b16 %v713, %v712
        %730 = vmatpush.bf16.xpose.msra.mxu0 %v721
        %731 = vmatpush.bf16.xpose.msra.mxu0 %v720
        %732 = vmatpush.bf16.xpose.msra.mxu0 %v719
        %733 = vmatpush.bf16.xpose.msra.mxu0 %v718
        %734 = vmatpush.bf16.xpose.msra.mxu0 %v717
        %735 = vmatpush.bf16.xpose.msra.mxu0 %v716
        %736 = vmatpush.bf16.xpose.msra.mxu0 %v715
        %737 = vmatpush.bf16.xpose.msra.mxu0 %v714
        %738 = vmatmul.bf16.gmra.mxu0 %v366
        %v739 = vpop.f32.mrf.mxu0
        %v740 = vadd.f32 0.0, %v739
        %v741 = vpop.f32.mrf.mxu0
        %742 = vdwg.mxu0
        %v759 = vunpack.c.l.b16 %v435
        %v760 = vunpack.c.l.b16 %v436
        %v761 = vunpack.c.l.b16 %v437
        %v762 = vunpack.c.l.b16 %v438
        %v763 = vunpack.c.l.b16 %v439
        %v764 = vunpack.c.l.b16 %v440
        %v765 = vunpack.c.l.b16 %v441
        %v766 = vunpack.c.l.b16 %v442
        %v767 = vunpack.c.l.b16 %v443
        %v768 = vunpack.c.l.b16 %v444
        %v769 = vunpack.c.l.b16 %v445
        %v770 = vunpack.c.l.b16 %v446
        %v771 = vunpack.c.l.b16 %v447
        %v772 = vunpack.c.l.b16 %v448
        %v773 = vunpack.c.l.b16 %v449
        %v774 = vunpack.c.l.b16 %v450
        %v775 = vpack.c.b16 %v760, %v759
        %v776 = vpack.c.b16 %v762, %v761
        %v777 = vpack.c.b16 %v764, %v763
        %v778 = vpack.c.b16 %v766, %v765
        %v779 = vpack.c.b16 %v768, %v767
        %v780 = vpack.c.b16 %v770, %v769
        %v781 = vpack.c.b16 %v772, %v771
        %v782 = vpack.c.b16 %v774, %v773
        %791 = vmatpush.bf16.xpose.msra.mxu0 %v782
        %792 = vmatpush.bf16.xpose.msra.mxu0 %v781
        %793 = vmatpush.bf16.xpose.msra.mxu0 %v780
        %794 = vmatpush.bf16.xpose.msra.mxu0 %v779
        %795 = vmatpush.bf16.xpose.msra.mxu0 %v778
        %796 = vmatpush.bf16.xpose.msra.mxu0 %v777
        %797 = vmatpush.bf16.xpose.msra.mxu0 %v776
        %798 = vmatpush.bf16.xpose.msra.mxu0 %v775
        %799 = vmatmul.bf16.gmra.mxu0 %v367
        %v800 = vpop.f32.mrf.mxu0
        %v801 = vadd.f32 0.0, %v800
        %v802 = vpop.f32.mrf.mxu0
        %803 = vdwg.mxu0
        %v820 = vunpack.c.l.b16 %v451
        %v821 = vunpack.c.l.b16 %v452
        %v822 = vunpack.c.l.b16 %v453
        %v823 = vunpack.c.l.b16 %v454
        %v824 = vunpack.c.l.b16 %v455
        %v825 = vunpack.c.l.b16 %v456
        %v826 = vunpack.c.l.b16 %v457
        %v827 = vunpack.c.l.b16 %v458
        %v828 = vunpack.c.l.b16 %v459
        %v829 = vunpack.c.l.b16 %v460
        %v830 = vunpack.c.l.b16 %v461
        %v831 = vunpack.c.l.b16 %v462
        %v832 = vunpack.c.l.b16 %v463
        %v833 = vunpack.c.l.b16 %v464
        %v834 = vunpack.c.l.b16 %v465
        %v835 = vunpack.c.l.b16 %v466
        %v836 = vpack.c.b16 %v821, %v820
        %v837 = vpack.c.b16 %v823, %v822
        %v838 = vpack.c.b16 %v825, %v824
        %v839 = vpack.c.b16 %v827, %v826
        %v840 = vpack.c.b16 %v829, %v828
        %v841 = vpack.c.b16 %v831, %v830
        %v842 = vpack.c.b16 %v833, %v832
        %v843 = vpack.c.b16 %v835, %v834
        %852 = vmatpush.bf16.xpose.msra.mxu0 %v843
        %853 = vmatpush.bf16.xpose.msra.mxu0 %v842
        %854 = vmatpush.bf16.xpose.msra.mxu0 %v841
        %855 = vmatpush.bf16.xpose.msra.mxu0 %v840
        %856 = vmatpush.bf16.xpose.msra.mxu0 %v839
        %857 = vmatpush.bf16.xpose.msra.mxu0 %v838
        %858 = vmatpush.bf16.xpose.msra.mxu0 %v837
        %859 = vmatpush.bf16.xpose.msra.mxu0 %v836
        %860 = vmatmul.bf16.gmra.mxu0 %v368
        %v861 = vpop.f32.mrf.mxu0
        %v862 = vadd.f32 0.0, %v861
        %v863 = vpop.f32.mrf.mxu0
        %864 = vdwg.mxu0
        %v881 = vunpack.c.l.b16 %v467
        %v882 = vunpack.c.l.b16 %v468
        %v883 = vunpack.c.l.b16 %v469
        %v884 = vunpack.c.l.b16 %v470
        %v885 = vunpack.c.l.b16 %v471
        %v886 = vunpack.c.l.b16 %v472
        %v887 = vunpack.c.l.b16 %v473
        %v888 = vunpack.c.l.b16 %v474
        %v889 = vunpack.c.l.b16 %v475
        %v890 = vunpack.c.l.b16 %v476
        %v891 = vunpack.c.l.b16 %v477
        %v892 = vunpack.c.l.b16 %v478
        %v893 = vunpack.c.l.b16 %v479
        %v894 = vunpack.c.l.b16 %v480
        %v895 = vunpack.c.l.b16 %v481
        %v896 = vunpack.c.l.b16 %v482
        %v897 = vpack.c.b16 %v882, %v881
        %v898 = vpack.c.b16 %v884, %v883
        %v899 = vpack.c.b16 %v886, %v885
        %v900 = vpack.c.b16 %v888, %v887
        %v901 = vpack.c.b16 %v890, %v889
        %v902 = vpack.c.b16 %v892, %v891
        %v903 = vpack.c.b16 %v894, %v893
        %v904 = vpack.c.b16 %v896, %v895
        %913 = vmatpush.bf16.xpose.msra.mxu0 %v904
        %914 = vmatpush.bf16.xpose.msra.mxu0 %v903
        %915 = vmatpush.bf16.xpose.msra.mxu0 %v902
        %916 = vmatpush.bf16.xpose.msra.mxu0 %v901
        %917 = vmatpush.bf16.xpose.msra.mxu0 %v900
        %918 = vmatpush.bf16.xpose.msra.mxu0 %v899
        %919 = vmatpush.bf16.xpose.msra.mxu0 %v898
        %920 = vmatpush.bf16.xpose.msra.mxu0 %v897
        %921 = vmatmul.bf16.gmra.mxu0 %v369
        %v922 = vpop.f32.mrf.mxu0
        %v923 = vadd.f32 0.0, %v922
        %v924 = vpop.f32.mrf.mxu0
        %925 = vdwg.mxu0
        %v942 = vunpack.c.l.b16 %v483
        %v943 = vunpack.c.l.b16 %v484
        %v944 = vunpack.c.l.b16 %v485
        %v945 = vunpack.c.l.b16 %v486
        %v946 = vunpack.c.l.b16 %v487
        %v947 = vunpack.c.l.b16 %v488
        %v948 = vunpack.c.l.b16 %v489
        %v949 = vunpack.c.l.b16 %v490
        %v950 = vunpack.c.l.b16 %v491
        %v951 = vunpack.c.l.b16 %v492
        %v952 = vunpack.c.l.b16 %v493
        %v953 = vunpack.c.l.b16 %v494
        %v954 = vunpack.c.l.b16 %v495
        %v955 = vunpack.c.l.b16 %v496
        %v956 = vunpack.c.l.b16 %v497
        %v957 = vunpack.c.l.b16 %v498
        %v958 = vpack.c.b16 %v943, %v942
        %v959 = vpack.c.b16 %v945, %v944
        %v960 = vpack.c.b16 %v947, %v946
        %v961 = vpack.c.b16 %v949, %v948
        %v962 = vpack.c.b16 %v951, %v950
        %v963 = vpack.c.b16 %v953, %v952
        %v964 = vpack.c.b16 %v955, %v954
        %v965 = vpack.c.b16 %v957, %v956
        %974 = vmatpush.bf16.xpose.msra.mxu0 %v965
        %975 = vmatpush.bf16.xpose.msra.mxu0 %v964
        %976 = vmatpush.bf16.xpose.msra.mxu0 %v963
        %977 = vmatpush.bf16.xpose.msra.mxu0 %v962
        %978 = vmatpush.bf16.xpose.msra.mxu0 %v961
        %979 = vmatpush.bf16.xpose.msra.mxu0 %v960
        %980 = vmatpush.bf16.xpose.msra.mxu0 %v959
        %981 = vmatpush.bf16.xpose.msra.mxu0 %v958
        %982 = vmatmul.bf16.gmra.mxu0 %v370
        %v983 = vpop.f32.mrf.mxu0
        %v984 = vadd.f32 0.0, %v983
        %v985 = vpop.f32.mrf.mxu0
        %986 = vdwg.mxu0
        %v987 = vld [vmem:[%s342] sm:$0xff]
        %v996 = vrot.slane %v618, 7
        %vm997 = vcmask 1041409
        %v998 = vsel %vm997, %v996, %v557
        %v999 = vrot.slane %v679, 6
        %vm1000 = vcmask 1042434
        %v1001 = vsel %vm1000, %v999, %v998
        %v1002 = vrot.slane %v740, 5
        %vm1003 = vcmask 1043459
        %v1004 = vsel %vm1003, %v1002, %v1001
        %v1005 = vrot.slane %v801, 4
        %vm1006 = vcmask 1044484
        %v1007 = vsel %vm1006, %v1005, %v1004
        %v1008 = vrot.slane %v862, 3
        %vm1009 = vcmask 1045509
        %v1010 = vsel %vm1009, %v1008, %v1007
        %v1011 = vrot.slane %v923, 2
        %vm1012 = vcmask 1046534
        %v1013 = vsel %vm1012, %v1011, %v1010
        %v1014 = vrot.slane %v984, 1
        %vm1015 = vcmask 1047559
        %v1016 = vsel %vm1015, %v1014, %v1013
        %v1018 = vmul.f32 %v987, %v1016
        %v1019 = vlaneseq
        %v1020 = vshrl.u32 %v1019, 7
        %v1021 = vadd.s32 %v1020, 8
        %v1022 = vadd.s32 %v1020, 16
        %v1023 = vadd.s32 %v1020, 24
        %v1024 = vadd.s32 %v1020, 32
        %v1025 = vadd.s32 %v1020, 40
        %v1026 = vadd.s32 %v1020, 48
        %v1027 = vadd.s32 %v1020, 56
        %v1028 = vadd.s32 %v1020, 64
        %v1029 = vadd.s32 %v1020, 72
        %v1030 = vadd.s32 %v1020, 80
        %v1031 = vadd.s32 %v1020, 88
        %v1032 = vadd.s32 %v1020, 96
        %v1033 = vadd.s32 %v1020, 104
        %v1034 = vadd.s32 %v1020, 112
        %v1035 = vadd.s32 %v1020, 120
        %v1036 = vlaneseq
        %v1037 = vand.u32 %v1036, 127
        %v1038 = vmul.u32 %v1037, 16
        %vm1039 = vcmp.ge.s32.totalorder %v1020, %v1038
        %vm1040 = vcmp.ge.s32.totalorder %v1021, %v1038
        %vm1041 = vcmp.ge.s32.totalorder %v1022, %v1038
        %vm1042 = vcmp.ge.s32.totalorder %v1023, %v1038
        %vm1043 = vcmp.ge.s32.totalorder %v1024, %v1038
        %vm1044 = vcmp.ge.s32.totalorder %v1025, %v1038
        %vm1045 = vcmp.ge.s32.totalorder %v1026, %v1038
        %vm1046 = vcmp.ge.s32.totalorder %v1027, %v1038
        %vm1047 = vcmp.ge.s32.totalorder %v1028, %v1038
        %vm1048 = vcmp.ge.s32.totalorder %v1029, %v1038
        %vm1049 = vcmp.ge.s32.totalorder %v1030, %v1038
        %vm1050 = vcmp.ge.s32.totalorder %v1031, %v1038
        %vm1051 = vcmp.ge.s32.totalorder %v1032, %v1038
        %vm1052 = vcmp.ge.s32.totalorder %v1033, %v1038
        %vm1053 = vcmp.ge.s32.totalorder %v1034, %v1038
        %vm1054 = vcmp.ge.s32.totalorder %v1035, %v1038
        %v1055 = vadd.s32 %v1038, 16
        %vm1056 = vcmp.lt.s32.totalorder %v1020, %v1055
        %vm1057 = vcmp.lt.s32.totalorder %v1021, %v1055
        %vm1058 = vcmp.lt.s32.totalorder %v1022, %v1055
        %vm1059 = vcmp.lt.s32.totalorder %v1023, %v1055
        %vm1060 = vcmp.lt.s32.totalorder %v1024, %v1055
        %vm1061 = vcmp.lt.s32.totalorder %v1025, %v1055
        %vm1062 = vcmp.lt.s32.totalorder %v1026, %v1055
        %vm1063 = vcmp.lt.s32.totalorder %v1027, %v1055
        %vm1064 = vcmp.lt.s32.totalorder %v1028, %v1055
        %vm1065 = vcmp.lt.s32.totalorder %v1029, %v1055
        %vm1066 = vcmp.lt.s32.totalorder %v1030, %v1055
        %vm1067 = vcmp.lt.s32.totalorder %v1031, %v1055
        %vm1068 = vcmp.lt.s32.totalorder %v1032, %v1055
        %vm1069 = vcmp.lt.s32.totalorder %v1033, %v1055
        %vm1070 = vcmp.lt.s32.totalorder %v1034, %v1055
        %vm1071 = vcmp.lt.s32.totalorder %v1035, %v1055
        %vm1072 = vmand %vm1039, %vm1056
        %vm1073 = vmand %vm1040, %vm1057
        %vm1074 = vmand %vm1041, %vm1058
        %vm1075 = vmand %vm1042, %vm1059
        %vm1076 = vmand %vm1043, %vm1060
        %vm1077 = vmand %vm1044, %vm1061
        %vm1078 = vmand %vm1045, %vm1062
        %vm1079 = vmand %vm1046, %vm1063
        %vm1080 = vmand %vm1047, %vm1064
        %vm1081 = vmand %vm1048, %vm1065
        %vm1082 = vmand %vm1049, %vm1066
        %vm1083 = vmand %vm1050, %vm1067
        %vm1084 = vmand %vm1051, %vm1068
        %vm1085 = vmand %vm1052, %vm1069
        %vm1086 = vmand %vm1053, %vm1070
        %vm1087 = vmand %vm1054, %vm1071
        %v1088 = vsel %vm1072, 1, 0
        %v1089 = vsel %vm1073, 1, 0
        %v1090 = vsel %vm1074, 1, 0
        %v1091 = vsel %vm1075, 1, 0
        %v1092 = vsel %vm1076, 1, 0
        %v1093 = vsel %vm1077, 1, 0
        %v1094 = vsel %vm1078, 1, 0
        %v1095 = vsel %vm1079, 1, 0
        %v1096 = vsel %vm1080, 1, 0
        %v1097 = vsel %vm1081, 1, 0
        %v1098 = vsel %vm1082, 1, 0
        %v1099 = vsel %vm1083, 1, 0
        %v1100 = vsel %vm1084, 1, 0
        %v1101 = vsel %vm1085, 1, 0
        %v1102 = vsel %vm1086, 1, 0
        %v1103 = vsel %vm1087, 1, 0
        %v1104 = vcvt.s32.f32 %v1088
        %v1105 = vcvt.s32.f32 %v1089
        %v1106 = vcvt.s32.f32 %v1090
        %v1107 = vcvt.s32.f32 %v1091
        %v1108 = vcvt.s32.f32 %v1092
        %v1109 = vcvt.s32.f32 %v1093
        %v1110 = vcvt.s32.f32 %v1094
        %v1111 = vcvt.s32.f32 %v1095
        %v1112 = vcvt.s32.f32 %v1096
        %v1113 = vcvt.s32.f32 %v1097
        %v1114 = vcvt.s32.f32 %v1098
        %v1115 = vcvt.s32.f32 %v1099
        %v1116 = vcvt.s32.f32 %v1100
        %v1117 = vcvt.s32.f32 %v1101
        %v1118 = vcvt.s32.f32 %v1102
        %v1119 = vcvt.s32.f32 %v1103
        %v1120 = vand.u32 %v1119, 4294901760
        %1121 = vmatpush.msra.mxu0 %v1120
        %v1122 = vand.u32 %v1118, 4294901760
        %1123 = vmatpush.msra.mxu0 %v1122
        %v1124 = vand.u32 %v1117, 4294901760
        %1125 = vmatpush.msra.mxu0 %v1124
        %v1126 = vand.u32 %v1116, 4294901760
        %1127 = vmatpush.msra.mxu0 %v1126
        %v1128 = vand.u32 %v1115, 4294901760
        %1129 = vmatpush.msra.mxu0 %v1128
        %v1130 = vand.u32 %v1114, 4294901760
        %1131 = vmatpush.msra.mxu0 %v1130
        %v1132 = vand.u32 %v1113, 4294901760
        %1133 = vmatpush.msra.mxu0 %v1132
        %v1134 = vand.u32 %v1112, 4294901760
        %1135 = vmatpush.msra.mxu0 %v1134
        %v1136 = vand.u32 %v1111, 4294901760
        %1137 = vmatpush.msra.mxu0 %v1136
        %v1138 = vand.u32 %v1110, 4294901760
        %1139 = vmatpush.msra.mxu0 %v1138
        %v1140 = vand.u32 %v1109, 4294901760
        %1141 = vmatpush.msra.mxu0 %v1140
        %v1142 = vand.u32 %v1108, 4294901760
        %1143 = vmatpush.msra.mxu0 %v1142
        %v1144 = vand.u32 %v1107, 4294901760
        %1145 = vmatpush.msra.mxu0 %v1144
        %v1146 = vand.u32 %v1106, 4294901760
        %1147 = vmatpush.msra.mxu0 %v1146
        %v1148 = vand.u32 %v1105, 4294901760
        %1149 = vmatpush.msra.mxu0 %v1148
        %v1150 = vand.u32 %v1104, 4294901760
        %1151 = vmatpush.msra.mxu0 %v1150
        %v1152 = vand.u32 %v1018, 4294901760
        %v1153 = vsub.f32 %v1018, %v1152
        %v1154 = vand.u32 %v1153, 4294901760
        %v1155 = vsub.f32 %v1153, %v1154
        %v1156 = vand.u32 %v1155, 4294901760
        %1157 = vmatmul.f32.gmra.mxu0 %v1156
        %v1158 = vpop.f32.mrf.mxu0
        %v1159 = vadd.f32 0.0, %v1158
        %1160 = vdwg.mxu0
        %v1161 = vand.u32 %v1119, 4294901760
        %v1162 = vsub.f32 %v1119, %v1161
        %v1163 = vand.u32 %v1162, 4294901760
        %v1164 = vsub.f32 %v1162, %v1163
        %v1165 = vand.u32 %v1164, 4294901760
        %1166 = vmatpush.msra.mxu0 %v1165
        %v1167 = vand.u32 %v1118, 4294901760
        %v1168 = vsub.f32 %v1118, %v1167
        %v1169 = vand.u32 %v1168, 4294901760
        %v1170 = vsub.f32 %v1168, %v1169
        %v1171 = vand.u32 %v1170, 4294901760
        %1172 = vmatpush.msra.mxu0 %v1171
        %v1173 = vand.u32 %v1117, 4294901760
        %v1174 = vsub.f32 %v1117, %v1173
        %v1175 = vand.u32 %v1174, 4294901760
        %v1176 = vsub.f32 %v1174, %v1175
        %v1177 = vand.u32 %v1176, 4294901760
        %1178 = vmatpush.msra.mxu0 %v1177
        %v1179 = vand.u32 %v1116, 4294901760
        %v1180 = vsub.f32 %v1116, %v1179
        %v1181 = vand.u32 %v1180, 4294901760
        %v1182 = vsub.f32 %v1180, %v1181
        %v1183 = vand.u32 %v1182, 4294901760
        %1184 = vmatpush.msra.mxu0 %v1183
        %v1185 = vand.u32 %v1115, 4294901760
        %v1186 = vsub.f32 %v1115, %v1185
        %v1187 = vand.u32 %v1186, 4294901760
        %v1188 = vsub.f32 %v1186, %v1187
        %v1189 = vand.u32 %v1188, 4294901760
        %1190 = vmatpush.msra.mxu0 %v1189
        %v1191 = vand.u32 %v1114, 4294901760
        %v1192 = vsub.f32 %v1114, %v1191
        %v1193 = vand.u32 %v1192, 4294901760
        %v1194 = vsub.f32 %v1192, %v1193
        %v1195 = vand.u32 %v1194, 4294901760
        %1196 = vmatpush.msra.mxu0 %v1195
        %v1197 = vand.u32 %v1113, 4294901760
        %v1198 = vsub.f32 %v1113, %v1197
        %v1199 = vand.u32 %v1198, 4294901760
        %v1200 = vsub.f32 %v1198, %v1199
        %v1201 = vand.u32 %v1200, 4294901760
        %1202 = vmatpush.msra.mxu0 %v1201
        %v1203 = vand.u32 %v1112, 4294901760
        %v1204 = vsub.f32 %v1112, %v1203
        %v1205 = vand.u32 %v1204, 4294901760
        %v1206 = vsub.f32 %v1204, %v1205
        %v1207 = vand.u32 %v1206, 4294901760
        %1208 = vmatpush.msra.mxu0 %v1207
        %v1209 = vand.u32 %v1111, 4294901760
        %v1210 = vsub.f32 %v1111, %v1209
        %v1211 = vand.u32 %v1210, 4294901760
        %v1212 = vsub.f32 %v1210, %v1211
        %v1213 = vand.u32 %v1212, 4294901760
        %1214 = vmatpush.msra.mxu0 %v1213
        %v1215 = vand.u32 %v1110, 4294901760
        %v1216 = vsub.f32 %v1110, %v1215
        %v1217 = vand.u32 %v1216, 4294901760
        %v1218 = vsub.f32 %v1216, %v1217
        %v1219 = vand.u32 %v1218, 4294901760
        %1220 = vmatpush.msra.mxu0 %v1219
        %v1221 = vand.u32 %v1109, 4294901760
        %v1222 = vsub.f32 %v1109, %v1221
        %v1223 = vand.u32 %v1222, 4294901760
        %v1224 = vsub.f32 %v1222, %v1223
        %v1225 = vand.u32 %v1224, 4294901760
        %1226 = vmatpush.msra.mxu0 %v1225
        %v1227 = vand.u32 %v1108, 4294901760
        %v1228 = vsub.f32 %v1108, %v1227
        %v1229 = vand.u32 %v1228, 4294901760
        %v1230 = vsub.f32 %v1228, %v1229
        %v1231 = vand.u32 %v1230, 4294901760
        %1232 = vmatpush.msra.mxu0 %v1231
        %v1233 = vand.u32 %v1107, 4294901760
        %v1234 = vsub.f32 %v1107, %v1233
        %v1235 = vand.u32 %v1234, 4294901760
        %v1236 = vsub.f32 %v1234, %v1235
        %v1237 = vand.u32 %v1236, 4294901760
        %1238 = vmatpush.msra.mxu0 %v1237
        %v1239 = vand.u32 %v1106, 4294901760
        %v1240 = vsub.f32 %v1106, %v1239
        %v1241 = vand.u32 %v1240, 4294901760
        %v1242 = vsub.f32 %v1240, %v1241
        %v1243 = vand.u32 %v1242, 4294901760
        %1244 = vmatpush.msra.mxu0 %v1243
        %v1245 = vand.u32 %v1105, 4294901760
        %v1246 = vsub.f32 %v1105, %v1245
        %v1247 = vand.u32 %v1246, 4294901760
        %v1248 = vsub.f32 %v1246, %v1247
        %v1249 = vand.u32 %v1248, 4294901760
        %1250 = vmatpush.msra.mxu0 %v1249
        %v1251 = vand.u32 %v1104, 4294901760
        %v1252 = vsub.f32 %v1104, %v1251
        %v1253 = vand.u32 %v1252, 4294901760
        %v1254 = vsub.f32 %v1252, %v1253
        %v1255 = vand.u32 %v1254, 4294901760
        %1256 = vmatpush.msra.mxu0 %v1255
        %v1257 = vand.u32 %v1018, 4294901760
        %1258 = vmatmul.f32.gmra.mxu0 %v1257
        %v1259 = vpop.f32.mrf.mxu0
        %v1260 = vadd.f32 %v1159, %v1259
        %1261 = vdwg.mxu0
        %v1262 = vand.u32 %v1119, 4294901760
        %v1263 = vsub.f32 %v1119, %v1262
        %1264 = vmatpush.msra.mxu0 %v1263
        %v1265 = vand.u32 %v1118, 4294901760
        %v1266 = vsub.f32 %v1118, %v1265
        %1267 = vmatpush.msra.mxu0 %v1266
        %v1268 = vand.u32 %v1117, 4294901760
        %v1269 = vsub.f32 %v1117, %v1268
        %1270 = vmatpush.msra.mxu0 %v1269
        %v1271 = vand.u32 %v1116, 4294901760
        %v1272 = vsub.f32 %v1116, %v1271
        %1273 = vmatpush.msra.mxu0 %v1272
        %v1274 = vand.u32 %v1115, 4294901760
        %v1275 = vsub.f32 %v1115, %v1274
        %1276 = vmatpush.msra.mxu0 %v1275
        %v1277 = vand.u32 %v1114, 4294901760
        %v1278 = vsub.f32 %v1114, %v1277
        %1279 = vmatpush.msra.mxu0 %v1278
        %v1280 = vand.u32 %v1113, 4294901760
        %v1281 = vsub.f32 %v1113, %v1280
        %1282 = vmatpush.msra.mxu0 %v1281
        %v1283 = vand.u32 %v1112, 4294901760
        %v1284 = vsub.f32 %v1112, %v1283
        %1285 = vmatpush.msra.mxu0 %v1284
        %v1286 = vand.u32 %v1111, 4294901760
        %v1287 = vsub.f32 %v1111, %v1286
        %1288 = vmatpush.msra.mxu0 %v1287
        %v1289 = vand.u32 %v1110, 4294901760
        %v1290 = vsub.f32 %v1110, %v1289
        %1291 = vmatpush.msra.mxu0 %v1290
        %v1292 = vand.u32 %v1109, 4294901760
        %v1293 = vsub.f32 %v1109, %v1292
        %1294 = vmatpush.msra.mxu0 %v1293
        %v1295 = vand.u32 %v1108, 4294901760
        %v1296 = vsub.f32 %v1108, %v1295
        %1297 = vmatpush.msra.mxu0 %v1296
        %v1298 = vand.u32 %v1107, 4294901760
        %v1299 = vsub.f32 %v1107, %v1298
        %1300 = vmatpush.msra.mxu0 %v1299
        %v1301 = vand.u32 %v1106, 4294901760
        %v1302 = vsub.f32 %v1106, %v1301
        %1303 = vmatpush.msra.mxu0 %v1302
        %v1304 = vand.u32 %v1105, 4294901760
        %v1305 = vsub.f32 %v1105, %v1304
        %1306 = vmatpush.msra.mxu0 %v1305
        %v1307 = vand.u32 %v1104, 4294901760
        %v1308 = vsub.f32 %v1104, %v1307
        %1309 = vmatpush.msra.mxu0 %v1308
        %v1310 = vand.u32 %v1018, 4294901760
        %v1311 = vsub.f32 %v1018, %v1310
        %1312 = vmatmul.f32.gmra.mxu0 %v1311
        %v1313 = vpop.f32.mrf.mxu0
        %v1314 = vadd.f32 %v1260, %v1313
        %1315 = vdwg.mxu0
        %v1316 = vand.u32 %v1119, 4294901760
        %1317 = vmatpush.msra.mxu0 %v1316
        %v1318 = vand.u32 %v1118, 4294901760
        %1319 = vmatpush.msra.mxu0 %v1318
        %v1320 = vand.u32 %v1117, 4294901760
        %1321 = vmatpush.msra.mxu0 %v1320
        %v1322 = vand.u32 %v1116, 4294901760
        %1323 = vmatpush.msra.mxu0 %v1322
        %v1324 = vand.u32 %v1115, 4294901760
        %1325 = vmatpush.msra.mxu0 %v1324
        %v1326 = vand.u32 %v1114, 4294901760
        %1327 = vmatpush.msra.mxu0 %v1326
        %v1328 = vand.u32 %v1113, 4294901760
        %1329 = vmatpush.msra.mxu0 %v1328
        %v1330 = vand.u32 %v1112, 4294901760
        %1331 = vmatpush.msra.mxu0 %v1330
        %v1332 = vand.u32 %v1111, 4294901760
        %1333 = vmatpush.msra.mxu0 %v1332
        %v1334 = vand.u32 %v1110, 4294901760
        %1335 = vmatpush.msra.mxu0 %v1334
        %v1336 = vand.u32 %v1109, 4294901760
        %1337 = vmatpush.msra.mxu0 %v1336
        %v1338 = vand.u32 %v1108, 4294901760
        %1339 = vmatpush.msra.mxu0 %v1338
        %v1340 = vand.u32 %v1107, 4294901760
        %1341 = vmatpush.msra.mxu0 %v1340
        %v1342 = vand.u32 %v1106, 4294901760
        %1343 = vmatpush.msra.mxu0 %v1342
        %v1344 = vand.u32 %v1105, 4294901760
        %1345 = vmatpush.msra.mxu0 %v1344
        %v1346 = vand.u32 %v1104, 4294901760
        %1347 = vmatpush.msra.mxu0 %v1346
        %v1348 = vand.u32 %v1018, 4294901760
        %v1349 = vsub.f32 %v1018, %v1348
        %v1350 = vand.u32 %v1349, 4294901760
        %1351 = vmatmul.f32.gmra.mxu0 %v1350
        %v1352 = vpop.f32.mrf.mxu0
        %v1353 = vadd.f32 %v1314, %v1352
        %1354 = vdwg.mxu0
        %v1355 = vand.u32 %v1119, 4294901760
        %v1356 = vsub.f32 %v1119, %v1355
        %v1357 = vand.u32 %v1356, 4294901760
        %1358 = vmatpush.msra.mxu0 %v1357
        %v1359 = vand.u32 %v1118, 4294901760
        %v1360 = vsub.f32 %v1118, %v1359
        %v1361 = vand.u32 %v1360, 4294901760
        %1362 = vmatpush.msra.mxu0 %v1361
        %v1363 = vand.u32 %v1117, 4294901760
        %v1364 = vsub.f32 %v1117, %v1363
        %v1365 = vand.u32 %v1364, 4294901760
        %1366 = vmatpush.msra.mxu0 %v1365
        %v1367 = vand.u32 %v1116, 4294901760
        %v1368 = vsub.f32 %v1116, %v1367
        %v1369 = vand.u32 %v1368, 4294901760
        %1370 = vmatpush.msra.mxu0 %v1369
        %v1371 = vand.u32 %v1115, 4294901760
        %v1372 = vsub.f32 %v1115, %v1371
        %v1373 = vand.u32 %v1372, 4294901760
        %1374 = vmatpush.msra.mxu0 %v1373
        %v1375 = vand.u32 %v1114, 4294901760
        %v1376 = vsub.f32 %v1114, %v1375
        %v1377 = vand.u32 %v1376, 4294901760
        %1378 = vmatpush.msra.mxu0 %v1377
        %v1379 = vand.u32 %v1113, 4294901760
        %v1380 = vsub.f32 %v1113, %v1379
        %v1381 = vand.u32 %v1380, 4294901760
        %1382 = vmatpush.msra.mxu0 %v1381
        %v1383 = vand.u32 %v1112, 4294901760
        %v1384 = vsub.f32 %v1112, %v1383
        %v1385 = vand.u32 %v1384, 4294901760
        %1386 = vmatpush.msra.mxu0 %v1385
        %v1387 = vand.u32 %v1111, 4294901760
        %v1388 = vsub.f32 %v1111, %v1387
        %v1389 = vand.u32 %v1388, 4294901760
        %1390 = vmatpush.msra.mxu0 %v1389
        %v1391 = vand.u32 %v1110, 4294901760
        %v1392 = vsub.f32 %v1110, %v1391
        %v1393 = vand.u32 %v1392, 4294901760
        %1394 = vmatpush.msra.mxu0 %v1393
        %v1395 = vand.u32 %v1109, 4294901760
        %v1396 = vsub.f32 %v1109, %v1395
        %v1397 = vand.u32 %v1396, 4294901760
        %1398 = vmatpush.msra.mxu0 %v1397
        %v1399 = vand.u32 %v1108, 4294901760
        %v1400 = vsub.f32 %v1108, %v1399
        %v1401 = vand.u32 %v1400, 4294901760
        %1402 = vmatpush.msra.mxu0 %v1401
        %v1403 = vand.u32 %v1107, 4294901760
        %v1404 = vsub.f32 %v1107, %v1403
        %v1405 = vand.u32 %v1404, 4294901760
        %1406 = vmatpush.msra.mxu0 %v1405
        %v1407 = vand.u32 %v1106, 4294901760
        %v1408 = vsub.f32 %v1106, %v1407
        %v1409 = vand.u32 %v1408, 4294901760
        %1410 = vmatpush.msra.mxu0 %v1409
        %v1411 = vand.u32 %v1105, 4294901760
        %v1412 = vsub.f32 %v1105, %v1411
        %v1413 = vand.u32 %v1412, 4294901760
        %1414 = vmatpush.msra.mxu0 %v1413
        %v1415 = vand.u32 %v1104, 4294901760
        %v1416 = vsub.f32 %v1104, %v1415
        %v1417 = vand.u32 %v1416, 4294901760
        %1418 = vmatpush.msra.mxu0 %v1417
        %v1419 = vand.u32 %v1018, 4294901760
        %1420 = vmatmul.f32.gmra.mxu0 %v1419
        %v1421 = vpop.f32.mrf.mxu0
        %v1422 = vadd.f32 %v1353, %v1421
        %1423 = vdwg.mxu0
        %v1424 = vand.u32 %v1119, 4294901760
        %1425 = vmatpush.msra.mxu0 %v1424
        %v1426 = vand.u32 %v1118, 4294901760
        %1427 = vmatpush.msra.mxu0 %v1426
        %v1428 = vand.u32 %v1117, 4294901760
        %1429 = vmatpush.msra.mxu0 %v1428
        %v1430 = vand.u32 %v1116, 4294901760
        %1431 = vmatpush.msra.mxu0 %v1430
        %v1432 = vand.u32 %v1115, 4294901760
        %1433 = vmatpush.msra.mxu0 %v1432
        %v1434 = vand.u32 %v1114, 4294901760
        %1435 = vmatpush.msra.mxu0 %v1434
        %v1436 = vand.u32 %v1113, 4294901760
        %1437 = vmatpush.msra.mxu0 %v1436
        %v1438 = vand.u32 %v1112, 4294901760
        %1439 = vmatpush.msra.mxu0 %v1438
        %v1440 = vand.u32 %v1111, 4294901760
        %1441 = vmatpush.msra.mxu0 %v1440
        %v1442 = vand.u32 %v1110, 4294901760
        %1443 = vmatpush.msra.mxu0 %v1442
        %v1444 = vand.u32 %v1109, 4294901760
        %1445 = vmatpush.msra.mxu0 %v1444
        %v1446 = vand.u32 %v1108, 4294901760
        %1447 = vmatpush.msra.mxu0 %v1446
        %v1448 = vand.u32 %v1107, 4294901760
        %1449 = vmatpush.msra.mxu0 %v1448
        %v1450 = vand.u32 %v1106, 4294901760
        %1451 = vmatpush.msra.mxu0 %v1450
        %v1452 = vand.u32 %v1105, 4294901760
        %1453 = vmatpush.msra.mxu0 %v1452
        %v1454 = vand.u32 %v1104, 4294901760
        %1455 = vmatpush.msra.mxu0 %v1454
        %v1456 = vand.u32 %v1018, 4294901760
        %1457 = vmatmul.f32.gmra.mxu0 %v1456
        %v1458 = vpop.f32.mrf.mxu0
        %v1459 = vadd.f32 %v1422, %v1458
        %1460 = vdwg.mxu0
        %v1461 = vld [vmem:[%s346] sm:$0xff]
        %v1462 = vperm.slane %v1461, 0
        %v1463 = vlaneseq
        %v1464 = vshrl.u32 %v1463, 7
        %1466 = vset.pattern.permute.xlu0 %v1464
        %1467 = vperm.xlu0 %1466, %v1462
        %v1468 = vpop.permute.xlu0 %1467
        %v1469 = vperm.slane %v1461, 1
        %v1470 = vlaneseq
        %v1471 = vshrl.u32 %v1470, 7
        %1473 = vset.pattern.permute.xlu0 %v1471
        %1474 = vperm.xlu0 %1473, %v1469
        %v1475 = vpop.permute.xlu0 %1474
        %v1476 = vperm.slane %v1461, 2
        %v1477 = vlaneseq
        %v1478 = vshrl.u32 %v1477, 7
        %1480 = vset.pattern.permute.xlu0 %v1478
        %1481 = vperm.xlu0 %1480, %v1476
        %v1482 = vpop.permute.xlu0 %1481
        %v1483 = vperm.slane %v1461, 3
        %v1484 = vlaneseq
        %v1485 = vshrl.u32 %v1484, 7
        %1487 = vset.pattern.permute.xlu0 %v1485
        %1488 = vperm.xlu0 %1487, %v1483
        %v1489 = vpop.permute.xlu0 %1488
        %v1490 = vperm.slane %v1461, 4
        %v1491 = vlaneseq
        %v1492 = vshrl.u32 %v1491, 7
        %1494 = vset.pattern.permute.xlu0 %v1492
        %1495 = vperm.xlu0 %1494, %v1490
        %v1496 = vpop.permute.xlu0 %1495
        %v1497 = vperm.slane %v1461, 5
        %v1498 = vlaneseq
        %v1499 = vshrl.u32 %v1498, 7
        %1501 = vset.pattern.permute.xlu0 %v1499
        %1502 = vperm.xlu0 %1501, %v1497
        %v1503 = vpop.permute.xlu0 %1502
        %v1504 = vperm.slane %v1461, 6
        %v1505 = vlaneseq
        %v1506 = vshrl.u32 %v1505, 7
        %1508 = vset.pattern.permute.xlu0 %v1506
        %1509 = vperm.xlu0 %1508, %v1504
        %v1510 = vpop.permute.xlu0 %1509
        %v1511 = vperm.slane %v1461, 7
        %v1512 = vlaneseq
        %v1513 = vshrl.u32 %v1512, 7
        %1515 = vset.pattern.permute.xlu0 %v1513
        %1516 = vperm.xlu0 %1515, %v1511
        %v1517 = vpop.permute.xlu0 %1516
        %vm1518 = vcmp.eq.s32.totalorder %v1468, %v1037
        %vm1519 = vcmp.eq.s32.totalorder %v1475, %v1037
        %vm1520 = vcmp.eq.s32.totalorder %v1482, %v1037
        %vm1521 = vcmp.eq.s32.totalorder %v1489, %v1037
        %vm1522 = vcmp.eq.s32.totalorder %v1496, %v1037
        %vm1523 = vcmp.eq.s32.totalorder %v1503, %v1037
        %vm1524 = vcmp.eq.s32.totalorder %v1510, %v1037
        %vm1525 = vcmp.eq.s32.totalorder %v1517, %v1037
        %v1526 = vsel %vm1518, 1, 0
        %v1527 = vsel %vm1519, 1, 0
        %v1528 = vsel %vm1520, 1, 0
        %v1529 = vsel %vm1521, 1, 0
        %v1530 = vsel %vm1522, 1, 0
        %v1531 = vsel %vm1523, 1, 0
        %v1532 = vsel %vm1524, 1, 0
        %v1533 = vsel %vm1525, 1, 0
        %v1534 = vcvt.s32.f32 %v1526
        %v1535 = vcvt.s32.f32 %v1527
        %v1536 = vcvt.s32.f32 %v1528
        %v1537 = vcvt.s32.f32 %v1529
        %v1538 = vcvt.s32.f32 %v1530
        %v1539 = vcvt.s32.f32 %v1531
        %v1540 = vcvt.s32.f32 %v1532
        %v1541 = vcvt.s32.f32 %v1533
        %v1542 = vrot.slane %v1534, 4
        %v1543 = vadd.f32 %v1534, %v1542
        %v1544 = vrot.slane %v1543, 2
        %v1545 = vadd.f32 %v1543, %v1544
        %v1546 = vrot.slane %v1545, 1
        %v1547 = vadd.f32 %v1545, %v1546
        %v1548 = vrot.slane %v1535, 4
        %v1549 = vadd.f32 %v1535, %v1548
        %v1550 = vrot.slane %v1549, 2
        %v1551 = vadd.f32 %v1549, %v1550
        %v1552 = vrot.slane %v1551, 1
        %v1553 = vadd.f32 %v1551, %v1552
        %v1554 = vrot.slane %v1536, 4
        %v1555 = vadd.f32 %v1536, %v1554
        %v1556 = vrot.slane %v1555, 2
        %v1557 = vadd.f32 %v1555, %v1556
        %v1558 = vrot.slane %v1557, 1
        %v1559 = vadd.f32 %v1557, %v1558
        %v1560 = vrot.slane %v1537, 4
        %v1561 = vadd.f32 %v1537, %v1560
        %v1562 = vrot.slane %v1561, 2
        %v1563 = vadd.f32 %v1561, %v1562
        %v1564 = vrot.slane %v1563, 1
        %v1565 = vadd.f32 %v1563, %v1564
        %v1566 = vrot.slane %v1538, 4
        %v1567 = vadd.f32 %v1538, %v1566
        %v1568 = vrot.slane %v1567, 2
        %v1569 = vadd.f32 %v1567, %v1568
        %v1570 = vrot.slane %v1569, 1
        %v1571 = vadd.f32 %v1569, %v1570
        %v1572 = vrot.slane %v1539, 4
        %v1573 = vadd.f32 %v1539, %v1572
        %v1574 = vrot.slane %v1573, 2
        %v1575 = vadd.f32 %v1573, %v1574
        %v1576 = vrot.slane %v1575, 1
        %v1577 = vadd.f32 %v1575, %v1576
        %v1578 = vrot.slane %v1540, 4
        %v1579 = vadd.f32 %v1540, %v1578
        %v1580 = vrot.slane %v1579, 2
        %v1581 = vadd.f32 %v1579, %v1580
        %v1582 = vrot.slane %v1581, 1
        %v1583 = vadd.f32 %v1581, %v1582
        %v1584 = vrot.slane %v1541, 4
        %v1585 = vadd.f32 %v1541, %v1584
        %v1586 = vrot.slane %v1585, 2
        %v1587 = vadd.f32 %v1585, %v1586
        %v1588 = vrot.slane %v1587, 1
        %v1589 = vadd.f32 %v1587, %v1588
        %v1590 = vperm.slane %v1459, 0
        %v1591 = vlaneseq
        %v1592 = vshrl.u32 %v1591, 7
        %1594 = vset.pattern.permute.xlu0 %v1592
        %1595 = vperm.xlu0 %1594, %v1590
        %v1596 = vpop.permute.xlu0 %1595
        %v1597 = vperm.slane %v1459, 1
        %v1598 = vlaneseq
        %v1599 = vshrl.u32 %v1598, 7
        %1601 = vset.pattern.permute.xlu0 %v1599
        %1602 = vperm.xlu0 %1601, %v1597
        %v1603 = vpop.permute.xlu0 %1602
        %v1604 = vperm.slane %v1459, 2
        %v1605 = vlaneseq
        %v1606 = vshrl.u32 %v1605, 7
        %1608 = vset.pattern.permute.xlu0 %v1606
        %1609 = vperm.xlu0 %1608, %v1604
        %v1610 = vpop.permute.xlu0 %1609
        %v1611 = vperm.slane %v1459, 3
        %v1612 = vlaneseq
        %v1613 = vshrl.u32 %v1612, 7
        %1615 = vset.pattern.permute.xlu0 %v1613
        %1616 = vperm.xlu0 %1615, %v1611
        %v1617 = vpop.permute.xlu0 %1616
        %v1618 = vperm.slane %v1459, 4
        %v1619 = vlaneseq
        %v1620 = vshrl.u32 %v1619, 7
        %1622 = vset.pattern.permute.xlu0 %v1620
        %1623 = vperm.xlu0 %1622, %v1618
        %v1624 = vpop.permute.xlu0 %1623
        %v1625 = vperm.slane %v1459, 5
        %v1626 = vlaneseq
        %v1627 = vshrl.u32 %v1626, 7
        %1629 = vset.pattern.permute.xlu0 %v1627
        %1630 = vperm.xlu0 %1629, %v1625
        %v1631 = vpop.permute.xlu0 %1630
        %v1632 = vperm.slane %v1459, 6
        %v1633 = vlaneseq
        %v1634 = vshrl.u32 %v1633, 7
        %1636 = vset.pattern.permute.xlu0 %v1634
        %1637 = vperm.xlu0 %1636, %v1632
        %v1638 = vpop.permute.xlu0 %1637
        %v1639 = vperm.slane %v1459, 7
        %v1640 = vlaneseq
        %v1641 = vshrl.u32 %v1640, 7
        %1643 = vset.pattern.permute.xlu0 %v1641
        %1644 = vperm.xlu0 %1643, %v1639
        %v1645 = vpop.permute.xlu0 %1644
        %v1646 = vmul.f32 %v1596, %v1534
        %v1647 = vmul.f32 %v1603, %v1535
        %v1648 = vmul.f32 %v1610, %v1536
        %v1649 = vmul.f32 %v1617, %v1537
        %v1650 = vmul.f32 %v1624, %v1538
        %v1651 = vmul.f32 %v1631, %v1539
        %v1652 = vmul.f32 %v1638, %v1540
        %v1653 = vmul.f32 %v1645, %v1541
        %v1654 = vrot.slane %v1646, 4
        %v1655 = vadd.f32 %v1646, %v1654
        %v1656 = vrot.slane %v1655, 2
        %v1657 = vadd.f32 %v1655, %v1656
        %v1658 = vrot.slane %v1657, 1
        %v1659 = vadd.f32 %v1657, %v1658
        %v1660 = vrot.slane %v1647, 4
        %v1661 = vadd.f32 %v1647, %v1660
        %v1662 = vrot.slane %v1661, 2
        %v1663 = vadd.f32 %v1661, %v1662
        %v1664 = vrot.slane %v1663, 1
        %v1665 = vadd.f32 %v1663, %v1664
        %v1666 = vrot.slane %v1648, 4
        %v1667 = vadd.f32 %v1648, %v1666
        %v1668 = vrot.slane %v1667, 2
        %v1669 = vadd.f32 %v1667, %v1668
        %v1670 = vrot.slane %v1669, 1
        %v1671 = vadd.f32 %v1669, %v1670
        %v1672 = vrot.slane %v1649, 4
        %v1673 = vadd.f32 %v1649, %v1672
        %v1674 = vrot.slane %v1673, 2
        %v1675 = vadd.f32 %v1673, %v1674
        %v1676 = vrot.slane %v1675, 1
        %v1677 = vadd.f32 %v1675, %v1676
        %v1678 = vrot.slane %v1650, 4
        %v1679 = vadd.f32 %v1650, %v1678
        %v1680 = vrot.slane %v1679, 2
        %v1681 = vadd.f32 %v1679, %v1680
        %v1682 = vrot.slane %v1681, 1
        %v1683 = vadd.f32 %v1681, %v1682
        %v1684 = vrot.slane %v1651, 4
        %v1685 = vadd.f32 %v1651, %v1684
        %v1686 = vrot.slane %v1685, 2
        %v1687 = vadd.f32 %v1685, %v1686
        %v1688 = vrot.slane %v1687, 1
        %v1689 = vadd.f32 %v1687, %v1688
        %v1690 = vrot.slane %v1652, 4
        %v1691 = vadd.f32 %v1652, %v1690
        %v1692 = vrot.slane %v1691, 2
        %v1693 = vadd.f32 %v1691, %v1692
        %v1694 = vrot.slane %v1693, 1
        %v1695 = vadd.f32 %v1693, %v1694
        %v1696 = vrot.slane %v1653, 4
        %v1697 = vadd.f32 %v1653, %v1696
        %v1698 = vrot.slane %v1697, 2
        %v1699 = vadd.f32 %v1697, %v1698
        %v1700 = vrot.slane %v1699, 1
        %v1701 = vadd.f32 %v1699, %v1700
        %v1702 = vadd.f32 %v1547, 1e-08
        %v1703 = vadd.f32 %v1553, 1e-08
        %v1704 = vadd.f32 %v1559, 1e-08
        %v1705 = vadd.f32 %v1565, 1e-08
        %v1706 = vadd.f32 %v1571, 1e-08
        %v1707 = vadd.f32 %v1577, 1e-08
        %v1708 = vadd.f32 %v1583, 1e-08
        %v1709 = vadd.f32 %v1589, 1e-08
        %v1710 = vrcp.pop %v1702
        %v1711 = vmul.f32 %v1702, %v1710
        %v1712 = vsub.f32 1.0, %v1711
        %v1713 = vmul.f32 %v1710, %v1712
        %v1714 = vadd.f32 %v1710, %v1713
        %vm1715 = vweird.f32 %v1702
        %vm1716 = vweird.f32 %v1710
        %vm1717 = vmor %vm1715, %vm1716
        %v1718 = vsel %vm1717, %v1710, %v1714
        %v1719 = vand.u32 2147483647, %v1702
        %vm1720 = vcmp.eq.f32.partialorder %v1719, 8.507059e+37
        %v1721 = vand.u32 %v1702, 2147483648
        %v1722 = vor.u32 1.1754944e-38, %v1721
        %v1723 = vsel %vm1720, %v1722, %v1718
        %v1724 = vmul.f32 %v1659, %v1723
        %v1725 = vrcp.pop %v1703
        %v1726 = vmul.f32 %v1703, %v1725
        %v1727 = vsub.f32 1.0, %v1726
        %v1728 = vmul.f32 %v1725, %v1727
        %v1729 = vadd.f32 %v1725, %v1728
        %vm1730 = vweird.f32 %v1703
        %vm1731 = vweird.f32 %v1725
        %vm1732 = vmor %vm1730, %vm1731
        %v1733 = vsel %vm1732, %v1725, %v1729
        %v1734 = vand.u32 2147483647, %v1703
        %vm1735 = vcmp.eq.f32.partialorder %v1734, 8.507059e+37
        %v1736 = vand.u32 %v1703, 2147483648
        %v1737 = vor.u32 1.1754944e-38, %v1736
        %v1738 = vsel %vm1735, %v1737, %v1733
        %v1739 = vmul.f32 %v1665, %v1738
        %v1740 = vrcp.pop %v1704
        %v1741 = vmul.f32 %v1704, %v1740
        %v1742 = vsub.f32 1.0, %v1741
        %v1743 = vmul.f32 %v1740, %v1742
        %v1744 = vadd.f32 %v1740, %v1743
        %vm1745 = vweird.f32 %v1704
        %vm1746 = vweird.f32 %v1740
        %vm1747 = vmor %vm1745, %vm1746
        %v1748 = vsel %vm1747, %v1740, %v1744
        %v1749 = vand.u32 2147483647, %v1704
        %vm1750 = vcmp.eq.f32.partialorder %v1749, 8.507059e+37
        %v1751 = vand.u32 %v1704, 2147483648
        %v1752 = vor.u32 1.1754944e-38, %v1751
        %v1753 = vsel %vm1750, %v1752, %v1748
        %v1754 = vmul.f32 %v1671, %v1753
        %v1755 = vrcp.pop %v1705
        %v1756 = vmul.f32 %v1705, %v1755
        %v1757 = vsub.f32 1.0, %v1756
        %v1758 = vmul.f32 %v1755, %v1757
        %v1759 = vadd.f32 %v1755, %v1758
        %vm1760 = vweird.f32 %v1705
        %vm1761 = vweird.f32 %v1755
        %vm1762 = vmor %vm1760, %vm1761
        %v1763 = vsel %vm1762, %v1755, %v1759
        %v1764 = vand.u32 2147483647, %v1705
        %vm1765 = vcmp.eq.f32.partialorder %v1764, 8.507059e+37
        %v1766 = vand.u32 %v1705, 2147483648
        %v1767 = vor.u32 1.1754944e-38, %v1766
        %v1768 = vsel %vm1765, %v1767, %v1763
        %v1769 = vmul.f32 %v1677, %v1768
        %v1770 = vrcp.pop %v1706
        %v1771 = vmul.f32 %v1706, %v1770
        %v1772 = vsub.f32 1.0, %v1771
        %v1773 = vmul.f32 %v1770, %v1772
        %v1774 = vadd.f32 %v1770, %v1773
        %vm1775 = vweird.f32 %v1706
        %vm1776 = vweird.f32 %v1770
        %vm1777 = vmor %vm1775, %vm1776
        %v1778 = vsel %vm1777, %v1770, %v1774
        %v1779 = vand.u32 2147483647, %v1706
        %vm1780 = vcmp.eq.f32.partialorder %v1779, 8.507059e+37
        %v1781 = vand.u32 %v1706, 2147483648
        %v1782 = vor.u32 1.1754944e-38, %v1781
        %v1783 = vsel %vm1780, %v1782, %v1778
        %v1784 = vmul.f32 %v1683, %v1783
        %v1785 = vrcp.pop %v1707
        %v1786 = vmul.f32 %v1707, %v1785
        %v1787 = vsub.f32 1.0, %v1786
        %v1788 = vmul.f32 %v1785, %v1787
        %v1789 = vadd.f32 %v1785, %v1788
        %vm1790 = vweird.f32 %v1707
        %vm1791 = vweird.f32 %v1785
        %vm1792 = vmor %vm1790, %vm1791
        %v1793 = vsel %vm1792, %v1785, %v1789
        %v1794 = vand.u32 2147483647, %v1707
        %vm1795 = vcmp.eq.f32.partialorder %v1794, 8.507059e+37
        %v1796 = vand.u32 %v1707, 2147483648
        %v1797 = vor.u32 1.1754944e-38, %v1796
        %v1798 = vsel %vm1795, %v1797, %v1793
        %v1799 = vmul.f32 %v1689, %v1798
        %v1800 = vrcp.pop %v1708
        %v1801 = vmul.f32 %v1708, %v1800
        %v1802 = vsub.f32 1.0, %v1801
        %v1803 = vmul.f32 %v1800, %v1802
        %v1804 = vadd.f32 %v1800, %v1803
        %vm1805 = vweird.f32 %v1708
        %vm1806 = vweird.f32 %v1800
        %vm1807 = vmor %vm1805, %vm1806
        %v1808 = vsel %vm1807, %v1800, %v1804
        %v1809 = vand.u32 2147483647, %v1708
        %vm1810 = vcmp.eq.f32.partialorder %v1809, 8.507059e+37
        %v1811 = vand.u32 %v1708, 2147483648
        %v1812 = vor.u32 1.1754944e-38, %v1811
        %v1813 = vsel %vm1810, %v1812, %v1808
        %v1814 = vmul.f32 %v1695, %v1813
        %v1815 = vrcp.pop %v1709
        %v1816 = vmul.f32 %v1709, %v1815
        %v1817 = vsub.f32 1.0, %v1816
        %v1818 = vmul.f32 %v1815, %v1817
        %v1819 = vadd.f32 %v1815, %v1818
        %vm1820 = vweird.f32 %v1709
        %vm1821 = vweird.f32 %v1815
        %vm1822 = vmor %vm1820, %vm1821
        %v1823 = vsel %vm1822, %v1815, %v1819
        %v1824 = vand.u32 2147483647, %v1709
        %vm1825 = vcmp.eq.f32.partialorder %v1824, 8.507059e+37
        %v1826 = vand.u32 %v1709, 2147483648
        %v1827 = vor.u32 1.1754944e-38, %v1826
        %v1828 = vsel %vm1825, %v1827, %v1823
        %v1829 = vmul.f32 %v1701, %v1828
        %v1838 = vsel %vm997, %v1739, %v1724
        %v1839 = vsel %vm1000, %v1754, %v1838
        %v1840 = vsel %vm1003, %v1769, %v1839
        %v1841 = vsel %vm1006, %v1784, %v1840
        %v1842 = vsel %vm1009, %v1799, %v1841
        %v1843 = vsel %vm1012, %v1814, %v1842
        %v1844 = vsel %vm1015, %v1829, %v1843
        %1846 = vst [vmem:[%s326] sm:$0xff] %v1844
        %v1847 = vld [vmem:[%s350] sm:$0xff]
        %v1848 = vsub.s32 %v1847, 1
        %vm1849 = vcmp.gt.s32.totalorder %v1848, 0
        %v1850 = vsel %vm1849, %v1848, 0
        %vm1851 = vcmp.lt.s32.totalorder %v1037, 8
        %v1852 = vsel %vm1851, %v1844, -1e+30
        %1853 = vmax.xlane.f32.xlu0 %v1852
        %v1854 = vpop.xlane.xlu0 %1853
        %v1856 = vrot.slane %v1854, 1
        %v1857 = vrot.slane %v1854, 2
        %v1858 = vrot.slane %v1854, 3
        %v1859 = vrot.slane %v1854, 4
        %v1860 = vrot.slane %v1854, 5
        %v1861 = vrot.slane %v1854, 6
        %v1862 = vrot.slane %v1854, 7
        %v1871 = vsub.f32 %v1724, %v1854
        %v1872 = vsub.f32 %v1739, %v1856
        %v1873 = vsub.f32 %v1754, %v1857
        %v1874 = vsub.f32 %v1769, %v1858
        %v1875 = vsub.f32 %v1784, %v1859
        %v1876 = vsub.f32 %v1799, %v1860
        %v1877 = vsub.f32 %v1814, %v1861
        %v1878 = vsub.f32 %v1829, %v1862
        %v1879 = vmul.f32 %v1871, 1.442695
        %v1880 = vpow.pop %v1879
        %v1881 = vmul.f32 %v1872, 1.442695
        %v1882 = vpow.pop %v1881
        %v1883 = vmul.f32 %v1873, 1.442695
        %v1884 = vpow.pop %v1883
        %v1885 = vmul.f32 %v1874, 1.442695
        %v1886 = vpow.pop %v1885
        %v1887 = vmul.f32 %v1875, 1.442695
        %v1888 = vpow.pop %v1887
        %v1889 = vmul.f32 %v1876, 1.442695
        %v1890 = vpow.pop %v1889
        %v1891 = vmul.f32 %v1877, 1.442695
        %v1892 = vpow.pop %v1891
        %v1893 = vmul.f32 %v1878, 1.442695
        %v1894 = vpow.pop %v1893
        %v1903 = vrot.slane %v1882, 7
        %v1904 = vsel %vm997, %v1903, %v1880
        %v1905 = vrot.slane %v1884, 6
        %v1906 = vsel %vm1000, %v1905, %v1904
        %v1907 = vrot.slane %v1886, 5
        %v1908 = vsel %vm1003, %v1907, %v1906
        %v1909 = vrot.slane %v1888, 4
        %v1910 = vsel %vm1006, %v1909, %v1908
        %v1911 = vrot.slane %v1890, 3
        %v1912 = vsel %vm1009, %v1911, %v1910
        %v1913 = vrot.slane %v1892, 2
        %v1914 = vsel %vm1012, %v1913, %v1912
        %v1915 = vrot.slane %v1894, 1
        %v1916 = vsel %vm1015, %v1915, %v1914
        %v1918 = vsel %vm1851, %v1916, 0.0
        %1919 = vadd.xlane.f32.xlu0 %v1918
        %v1920 = vpop.xlane.xlu0 %1919
        %v1921 = vlog2.pop %v1920
        %v1922 = vmul.f32 %v1921, 0.6931472
        %v1923 = vadd.f32 %v1922, %v1854
        %v1925 = vrot.slane %v1923, 1
        %v1926 = vrot.slane %v1923, 2
        %v1927 = vrot.slane %v1923, 3
        %v1928 = vrot.slane %v1923, 4
        %v1929 = vrot.slane %v1923, 5
        %v1930 = vrot.slane %v1923, 6
        %v1931 = vrot.slane %v1923, 7
        %v1940 = vsub.f32 %v1724, %v1923
        %v1941 = vsub.f32 %v1739, %v1925
        %v1942 = vsub.f32 %v1754, %v1926
        %v1943 = vsub.f32 %v1769, %v1927
        %v1944 = vsub.f32 %v1784, %v1928
        %v1945 = vsub.f32 %v1799, %v1929
        %v1946 = vsub.f32 %v1814, %v1930
        %v1947 = vsub.f32 %v1829, %v1931
        %1948 = vset.pattern.permute.xlu0 0
        %1949 = vperm.xlu0 %1948, %v1850
        %v1950 = vpop.permute.xlu0 %1949
        %vm1951 = vcmp.eq.s32.totalorder %v1037, %v1950
        %v1952 = vsel %vm1951, 1, 0
        %v1953 = vcvt.s32.f32 %v1952
        %v1962 = vrot.slane %v1941, 7
        %v1963 = vsel %vm997, %v1962, %v1940
        %v1964 = vrot.slane %v1942, 6
        %v1965 = vsel %vm1000, %v1964, %v1963
        %v1966 = vrot.slane %v1943, 5
        %v1967 = vsel %vm1003, %v1966, %v1965
        %v1968 = vrot.slane %v1944, 4
        %v1969 = vsel %vm1006, %v1968, %v1967
        %v1970 = vrot.slane %v1945, 3
        %v1971 = vsel %vm1009, %v1970, %v1969
        %v1972 = vrot.slane %v1946, 2
        %v1973 = vsel %vm1012, %v1972, %v1971
        %v1974 = vrot.slane %v1947, 1
        %v1975 = vsel %vm1015, %v1974, %v1973
        %v1977 = vmul.f32 %v1953, %v1975
        %1978 = vadd.xlane.f32.xlu0 %v1977
        %v1979 = vpop.xlane.xlu0 %1978
        %v1980 = vsub.f32 0.0, %v1979
        %vm1981 = vcmask 7168
        %1982 = vst.msk [vmem:[%s354] sm:$0xff] %vm1981, %v1980
        %s1983 = sand.u32 %s162, 1
        %s1984 = scalar_lea.sflag [#allocation4], %s1983
        %s1985 = sand.u32 %s162, 1
        %s1986 = smul.addr %s1985, 8
        %s1987 = scalar_lea.vmem [#allocation5], %s1986
        %p1988 = scmp.lt.s32.totalorder %s24, 1
        %s1989 = scalar_select %p1988, %s24, 1
        %s1990 = smul.addr %s1989, 8
        %s1991 = scalar_lea.vmem %s6, %s1990
        // Predicated region
        $region45: #{tpu_custom_call.1} parent=39 // pred_check
          %p1992 = pneg %p172
        $region46: #{tpu_custom_call.1} parent=39 // pred_check_branch
          %1994 = sbr.rel (%p1992) target = $region48
        $region47: #{tpu_custom_call.1} parent=39 // pred_region
          %1996 = vsyncadd %s1984, 0
          %s1997 = smul.addr %s24, 8
          %s1998 = scalar_lea.hbm %s5, %s1997
          %s2000 = sshll.u32 %s1987, 4
          %s2001 = int_to_ptr.vmem [resolvable:$true] %s2000
          %s2002 = sshll.u32 %s1998, 4
          %s2003 = int_to_ptr.hbm [resolvable:$true] %s2002
          %2005 = dma.vmem_to_hbm [thread:$0]  %s2001, 128, %s2003, %s1984
        $region48: #{tpu_custom_call.1} parent=39 // pred_fallthru
          _
        // Predicated region
        $region49: #{tpu_custom_call.1} parent=39 // pred_check
          %p2006 = pneg %p198
        $region50: #{tpu_custom_call.1} parent=39 // pred_check_branch
          %2008 = sbr.rel (%p2006) target = $region52
        $region51: #{tpu_custom_call.1} parent=39 // pred_region
          _
        $region52: #{tpu_custom_call.1} parent=39 // pred_fallthru
          _
      $region40: #{tpu_custom_call.1} parent=5 // pred_fallthru
        _
      %p2009 = scmp.le.s32.totalorder 2, %s19
      // Predicated region
      $region53: #{tpu_custom_call.1} parent=5 // pred_check
        %p2010 = pneg %p2009
      $region54: #{tpu_custom_call.1} parent=5 // pred_check_branch
        %2012 = sbr.rel (%p2010) target = $region56
      $region55: #{tpu_custom_call.1} parent=5 // pred_region
        %s2013 = ssub.s32 %s19, 2
        // Predicated region
        $region57: #{tpu_custom_call.1} parent=55 // pred_check
          %p2014 = pneg %p178
        $region58: #{tpu_custom_call.1} parent=55 // pred_check_branch
          %2016 = sbr.rel (%p2014) target = $region60
        $region59: #{tpu_custom_call.1} parent=55 // pred_region
          %s2017 = sand.u32 %s163, 1
          %s2018 = scalar_lea.sflag [#allocation4], %s2017
          %s2019 = sand.u32 %s163, 1
          %s2020 = smul.addr %s2019, 8
          %s2021 = scalar_lea.vmem [#allocation5], %s2020
          %2023 = dma.done %s2018, 128
        $region60: #{tpu_custom_call.1} parent=55 // pred_fallthru
          _
        // Predicated region
        $region61: #{tpu_custom_call.1} parent=55 // pred_check
          %p2024 = pneg %p204
        $region62: #{tpu_custom_call.1} parent=55 // pred_check_branch
          %2026 = sbr.rel (%p2024) target = $region64
        $region63: #{tpu_custom_call.1} parent=55 // pred_region
          %p2027 = scmp.lt.s32.totalorder %s25, 1
          %s2028 = scalar_select %p2027, %s25, 1
          %s2029 = smul.addr %s2028, 8
          %s2030 = scalar_lea.vmem %s6, %s2029
        $region64: #{tpu_custom_call.1} parent=55 // pred_fallthru
          _
      $region56: #{tpu_custom_call.1} parent=5 // pred_fallthru
        _
    $region6: #{tpu_custom_call.1} parent=1 // loop_footer
      %s23 = sadd.s32 1, %s19
    $region7: #{tpu_custom_call.1} parent=1 // loop_footer_branch
      %18 = sbr.rel target = $region3
    $region8: #{tpu_custom_call.1} parent=1 // loop_exit
      _
    %2031 = vsyncpa [#allocation3], 1
    %s2032 = scalar_lea.sflag [#allocation3], 1
    %2033 = vsyncpa %s2032, 1
    %2034 = vsyncpa [#allocation4], 1
    %s2035 = scalar_lea.sflag [#allocation4], 1
    %2036 = vsyncpa %s2035, 1

</llo_original>
